<compile_context>
chip_gen: v6e
topology: v6e:2x2x1
jax: 0.10.0
libtpu: 0.0.40
codegen_flags: <defaults>
</compile_context>

<pallas_src>
import functools
import math

import jax
import jax.numpy as jnp
from jax.experimental import pallas as pl
from jax.experimental.pallas import tpu as pltpu

# ---- module hyper-parameters (globals in the original file) -----------------
D_MODEL = 32
N_HEADS = 4
D_K = 8
D_V = 8
LN_EPS = 1e-5      # fresh nn.LayerNorm in forward(): weight=1, bias=0 (python float!)
NEG_INF = -1e9     # torch masked_fill_ value (python float -> inlined literal)


def _layer_norm(x):
    """LayerNorm over last dim, gamma=1, beta=0 (matches fresh nn.LayerNorm)."""
    mu = jnp.mean(x, axis=-1, keepdims=True)
    var = jnp.mean((x - mu) ** 2, axis=-1, keepdims=True)
    return (x - mu) * jax.lax.rsqrt(var + LN_EPS)


def _mha_kernel(lens_ref, x_ref, wqkv_ref, wo_ref, out_ref, attn_ref, *,
                bt, L, mxu_dtype):
    # lens_ref : SMEM (B,) int32              valid key length per batch element
    # x_ref    : VMEM (bt, L, D_MODEL) f32    self-attention input (also the residual)
    # wqkv_ref : VMEM (3H, D_MODEL, D_K)      head-major [Wq*scale | Wk | Wv]
    # wo_ref   : VMEM (H, D_V, D_MODEL)       head-major fc weight
    # out_ref  : VMEM (bt, L, D_MODEL) f32    LayerNorm(fc(ctx) + x), natural layout
    # attn_ref : VMEM (H, bt, L, L)   f32     softmax probabilities, natural layout
    H, DK, DV, DM = N_HEADS, D_K, D_V, D_MODEL
    base = pl.program_id(0) * bt

    x = x_ref[...]                                     # (bt, L, DM) f32
    xr = x.reshape(bt * L, DM)                         # leading-dim merge (free)
    xb = xr.astype(mxu_dtype)

    # -- fused, head-batched QKV projection: heads land on the leading axis ----
    xb_b = jnp.broadcast_to(xb[None], (3 * H, bt * L, DM))
    proj = jnp.einsum("trm,tmd->trd", xb_b, wqkv_ref[...],
                      preferred_element_type=jnp.float32)          # (3H, bt*L, DK)

    # leading-axis slices + tile-boundary reshapes (L % 8 == 0) -> no relayouts.
    # batch axis g = head*bt + batch keeps batch elements independent.
    q_g = proj[0:H].reshape(H * bt, L, DK).astype(mxu_dtype)        # scale folded into Wq
    k_g = proj[H:2 * H].reshape(H * bt, L, DK).astype(mxu_dtype)
    v_g = proj[2 * H:3 * H].reshape(H * bt, L, DV).astype(mxu_dtype)

    # -- scores: standard 3-D batched matmul on the MXU ------------------------
    scores = jnp.einsum("gqd,gkd->gqk", q_g, k_g,
                        preferred_element_type=jnp.float32)         # (H*bt, L, L)
    scores4 = scores.reshape(H, bt, L, L)                           # leading split (free)

    # -- key-padding mask from valid_lens in SMEM: mask[b, k] = k >= lens[b] ---
    # built once at shape (1, bt, 1, L) and broadcast over heads / queries.
    kpos = jax.lax.broadcasted_iota(jnp.int32, (1, bt, 1, L), 3)
    bidx = jax.lax.broadcasted_iota(jnp.int32, (1, bt, 1, L), 1)
    lens_b = jnp.zeros((1, bt, 1, L), jnp.int32)
    for b in range(bt):                                # tiny static select chain
        lens_b = jnp.where(bidx == b, lens_ref[base + b], lens_b)
    scores4 = jnp.where(kpos >= lens_b, NEG_INF, scores4)
    # NOTE: valid_lens[b] == 0 gives an all-masked row -> NaN, same as the reference.

    # -- softmax (f32); denominator reciprocal on the EUP slot -----------------
    m = jnp.max(scores4, axis=-1, keepdims=True)
    e = jnp.exp(scores4 - m)
    attn4 = e * pl.reciprocal(jnp.sum(e, axis=-1, keepdims=True), approx=True)

    # -- context + output projection (head-sum folded in, no lane concats) -----
    ctx = jnp.einsum("gqk,gkd->gqd",
                     attn4.reshape(H * bt, L, L).astype(mxu_dtype), v_g,
                     preferred_element_type=jnp.float32)            # (H*bt, L, DV)
    ctx_h = ctx.reshape(H, bt * L, DV).astype(mxu_dtype)
    outh = jnp.einsum("hrd,hdm->hrm", ctx_h, wo_ref[...],
                      preferred_element_type=jnp.float32)           # (H, bt*L, DM)
    y = _layer_norm(jnp.sum(outh, axis=0) + xr)        # residual = input_Q, fresh LN

    # -- natural-layout stores; wrapper handles the final transpose ------------
    out_ref[...] = y.reshape(bt, L, DM)
    attn_ref[...] = attn4


def _tensorcores_per_chip():
    """Best-effort TensorCores-per-chip query (v7x: 2). Safe fallback: 1."""
    try:
        info = pltpu.get_tpu_info()
    except Exception:
        return 1
    for name in ("num_cores", "core_count", "num_tensorcores", "tensor_core_count"):
        val = getattr(info, name, None)
        if isinstance(val, int) and 0 < val <= 8:
            return val
    return 1


def multi_head_attention(x, valid_lens, wq, wk, wv, wo, *, batch_tile=None,
                         mxu_dtype=jnp.bfloat16):
    """MultiHeadAttention.forward(x, x, x, pad_mask(valid_lens)).

    Returns (LayerNorm(fc(context) + x), attn) of shapes
    (B, L, d_model) and (B, n_heads, L, L).
    """
    B, L, D = x.shape
    assert D == D_MODEL and L % 8 == 0

    if batch_tile is None:
        tc = _tensorcores_per_chip()
        if tc > 1:
            # give every TensorCore at least one "parallel" grid step (v7x megacore);
            # single-TC chips (v5e/v6e) keep one step and avoid per-step overhead.
            steps = min(tc, B)
            batch_tile = max(d for d in range(1, B + 1) if B % d == 0 and B // d >= steps)
        else:
            batch_tile = B
    bt = batch_tile
    assert B % bt == 0

    # pack weights ONCE in the wrapper (free-ish, outside the kernel):
    #   * 1/sqrt(d_k) folded into Wq
    #   * fused [Wq|Wk|Wv] reshaped head-major to (3H, d_model, d_k)
    #   * fc reshaped head-major to (H, d_v, d_model)
    scale = 1.0 / math.sqrt(D_K)
    w_qkv = jnp.concatenate([wq * scale, wk, wv], axis=1)            # (D, 3*H*dk)
    wqkv3 = jnp.transpose(w_qkv.reshape(D_MODEL, 3 * N_HEADS, D_K),
                          (1, 0, 2)).astype(mxu_dtype)               # (3H, D, dk)
    wo3 = wo.reshape(N_HEADS, D_V, D_MODEL).astype(mxu_dtype)        # (H, dv, D)

    kernel = functools.partial(_mha_kernel, bt=bt, L=L, mxu_dtype=mxu_dtype)

    out, attn_hb = pl.pallas_call(
        kernel,
        out_shape=(jax.ShapeDtypeStruct((B, L, D_MODEL), jnp.float32),
                   jax.ShapeDtypeStruct((N_HEADS, B, L, L), jnp.float32)),
        grid=(B // bt,),
        in_specs=[
            pl.BlockSpec(memory_space=pltpu.MemorySpace.SMEM),              # valid_lens
            pl.BlockSpec((bt, L, D_MODEL), lambda i: (i, 0, 0)),            # x
            pl.BlockSpec((3 * N_HEADS, D_MODEL, D_K), lambda i: (0, 0, 0)),  # fused Wqkv
            pl.BlockSpec((N_HEADS, D_V, D_MODEL), lambda i: (0, 0, 0)),      # fc
        ],
        out_specs=(
            pl.BlockSpec((bt, L, D_MODEL), lambda i: (i, 0, 0)),
            pl.BlockSpec((N_HEADS, bt, L, L), lambda i: (0, i, 0, 0)),
        ),
        # raise vmem_limit_bytes here when scaling tiles up to realistic sizes
        compiler_params=pltpu.CompilerParams(
            dimension_semantics=("parallel",)),
    )(valid_lens.astype(jnp.int32), x, wqkv3, wo3)

    # transpose to the module's (B, n_heads, L, L) convention in plain JAX
    return out, jnp.transpose(attn_hb, (1, 0, 2, 3))


def _reference(x, attn_mask, wq, wk, wv, wo):
    """Pure-JAX (f32) reproduction of the PyTorch MultiHeadAttention.forward."""
    B, L, _ = x.shape
    q = jnp.transpose((x @ wq).reshape(B, L, N_HEADS, D_K), (0, 2, 1, 3))
    k = jnp.transpose((x @ wk).reshape(B, L, N_HEADS, D_K), (0, 2, 1, 3))
    v = jnp.transpose((x @ wv).reshape(B, L, N_HEADS, D_V), (0, 2, 1, 3))
    scores = jnp.einsum("bhqd,bhkd->bhqk", q, k) / math.sqrt(D_K)
    scores = jnp.where(attn_mask[:, None, :, :], -1e9, scores)
    attn = jax.nn.softmax(scores, axis=-1)
    ctx = jnp.einsum("bhqk,bhkd->bhqd", attn, v)
    ctx = jnp.transpose(ctx, (0, 2, 1, 3)).reshape(B, L, N_HEADS * D_V)
    return _layer_norm(ctx @ wo + x), attn


if __name__ == "__main__":
    B, L = 2, 8
    key = jax.random.PRNGKey(0)
    ks = jax.random.split(key, 5)

    x = jax.random.normal(ks[0], (B, L, D_MODEL), dtype=jnp.float32)
    valid_lens = jnp.array([8, 5], dtype=jnp.int32)       # key-padding lengths

    def init(k, shape, fan_in):
        bound = 1.0 / math.sqrt(fan_in)
        return jax.random.uniform(k, shape, jnp.float32, -bound, bound)

    # nn.Linear weights are (out, in) in torch; pass pre-transposed so x @ W works.
    wq = init(ks[1], (D_MODEL, N_HEADS * D_K), D_MODEL)
    wk = init(ks[2], (D_MODEL, N_HEADS * D_K), D_MODEL)
    wv = init(ks[3], (D_MODEL, N_HEADS * D_V), D_MODEL)
    wo = init(ks[4], (N_HEADS * D_V, D_MODEL), N_HEADS * D_V)

    out, attn = multi_head_attention(x, valid_lens, wq, wk, wv, wo)
    out = jax.block_until_ready(out)
    attn = jax.block_until_ready(attn)

    # torch-semantics reference with the explicit (B, L, L) boolean mask
    key_ids = jnp.arange(L)[None, None, :]
    mask = jnp.broadcast_to(key_ids >= valid_lens[:, None, None], (B, L, L))
    ref_out, ref_attn = _reference(x, mask, wq, wk, wv, wo)

    assert out.shape == (B, L, D_MODEL) and attn.shape == (B, N_HEADS, L, L)
    # bf16 MXU operands + EUP approx-reciprocal softmax => bf16-level tolerances
    assert jnp.allclose(out, ref_out, atol=5e-2, rtol=5e-2), \
        float(jnp.max(jnp.abs(out - ref_out)))
    assert jnp.allclose(attn, ref_attn, atol=2e-2, rtol=2e-2), \
        float(jnp.max(jnp.abs(attn - ref_attn)))

    print("KERNEL_OK")
</pallas_src>

<mosaic_0001>
module attributes {stable_mosaic.version = 11 : i64} {
  func.func @_mha_kernel(%arg0: i32, %arg1: memref<2xi32, #tpu.memory_space<smem>>, %arg2: memref<2x8x32xf32, #tpu.memory_space<vmem>>, %arg3: memref<12x32x8xbf16, #tpu.memory_space<vmem>>, %arg4: memref<4x8x32xbf16, #tpu.memory_space<vmem>>, %arg5: memref<2x8x32xf32, #tpu.memory_space<vmem>>, %arg6: memref<4x2x8x8xf32, #tpu.memory_space<vmem>>) attributes {dimension_semantics = [#tpu.dimension_semantics<parallel>], iteration_bounds = array<i64: 1>, scalar_prefetch = 0 : i64, scratch_operands = 0 : i64, tpu.core_type = #tpu.core_type<tc>, window_params = [{transform_indices = @transform_0, window_bounds = array<i64: 2>}, {transform_indices = @transform_1, window_bounds = array<i64: 2, 8, 32>}, {pipeline_mode = #tpu.pipeline_mode<synchronous>, transform_indices = @transform_2, window_bounds = array<i64: 12, 32, 8>}, {pipeline_mode = #tpu.pipeline_mode<synchronous>, transform_indices = @transform_3, window_bounds = array<i64: 4, 8, 32>}, {transform_indices = @transform_4, window_bounds = array<i64: 2, 8, 32>}, {transform_indices = @transform_5, window_bounds = array<i64: 4, 2, 8, 8>}]} {
    %c2_i32 = arith.constant 2 : i32
    %0 = arith.muli %arg0, %c2_i32 : i32
    %c0 = arith.constant 0 : index
    %c0_0 = arith.constant 0 : index
    %c0_1 = arith.constant 0 : index
    %1 = vector.load %arg2[%c0, %c0_0, %c0_1] : memref<2x8x32xf32, #tpu.memory_space<vmem>>, vector<2x8x32xf32>
    %2 = vector.shape_cast %1 : vector<2x8x32xf32> to vector<16x32xf32>
    %3 = arith.truncf %2 : vector<16x32xf32> to vector<16x32xbf16>
    %4 = vector.shape_cast %3 : vector<16x32xbf16> to vector<1x16x32xbf16>
    %5 = vector.shape_cast %4 : vector<1x16x32xbf16> to vector<1x16x32xbf16>
    %6 = vector.broadcast %5 : vector<1x16x32xbf16> to vector<12x16x32xbf16>
    %c0_2 = arith.constant 0 : index
    %c0_3 = arith.constant 0 : index
    %c0_4 = arith.constant 0 : index
    %7 = vector.load %arg3[%c0_2, %c0_3, %c0_4] : memref<12x32x8xbf16, #tpu.memory_space<vmem>>, vector<12x32x8xbf16>
    "tpu.trace_start"() <{level = 10 : i32, message = "trm,tmd->trd"}> : () -> ()
    %cst = arith.constant dense<0.000000e+00> : vector<12x16x8xf32>
    %8 = tpu.matmul %6, %7, %cst {dimension_numbers = #tpu.dot_dimension_numbers<[2], [1], [1], [2], [0, 0, 0, 1, 1, 2], [0], [0]>} : vector<12x16x32xbf16>, vector<12x32x8xbf16>, vector<12x16x8xf32> -> vector<12x16x8xf32>
    "tpu.trace_stop"() : () -> ()
    %9 = vector.extract_strided_slice %8 {offsets = [0, 0, 0], sizes = [4, 16, 8], strides = [1, 1, 1]} : vector<12x16x8xf32> to vector<4x16x8xf32>
    %10 = vector.shape_cast %9 : vector<4x16x8xf32> to vector<8x8x8xf32>
    %11 = arith.truncf %10 : vector<8x8x8xf32> to vector<8x8x8xbf16>
    %12 = vector.extract_strided_slice %8 {offsets = [4, 0, 0], sizes = [4, 16, 8], strides = [1, 1, 1]} : vector<12x16x8xf32> to vector<4x16x8xf32>
    %13 = vector.shape_cast %12 : vector<4x16x8xf32> to vector<8x8x8xf32>
    %14 = arith.truncf %13 : vector<8x8x8xf32> to vector<8x8x8xbf16>
    %15 = vector.extract_strided_slice %8 {offsets = [8, 0, 0], sizes = [4, 16, 8], strides = [1, 1, 1]} : vector<12x16x8xf32> to vector<4x16x8xf32>
    %16 = vector.shape_cast %15 : vector<4x16x8xf32> to vector<8x8x8xf32>
    %17 = arith.truncf %16 : vector<8x8x8xf32> to vector<8x8x8xbf16>
    "tpu.trace_start"() <{level = 10 : i32, message = "gqd,gkd->gqk"}> : () -> ()
    %cst_5 = arith.constant dense<0.000000e+00> : vector<8x8x8xf32>
    %18 = tpu.matmul %11, %14, %cst_5 {dimension_numbers = #tpu.dot_dimension_numbers<[2], [2], [1], [1], [0, 0, 0, 1, 1, 1], [0], [0]>} : vector<8x8x8xbf16>, vector<8x8x8xbf16>, vector<8x8x8xf32> -> vector<8x8x8xf32>
    "tpu.trace_stop"() : () -> ()
    %19 = vector.shape_cast %18 : vector<8x8x8xf32> to vector<4x2x8x8xf32>
    %20 = tpu.iota {dimensions = array<i32: 3>} : vector<1x2x1x8xi32>
    %21 = tpu.iota {dimensions = array<i32: 1>} : vector<1x2x1x8xi32>
    %c0_i32 = arith.constant 0 : i32
    %22 = vector.broadcast %c0_i32 : i32 to vector<1x2x1x8xi32>
    %c0_i32_6 = arith.constant 0 : i32
    %23 = vector.broadcast %c0_i32_6 : i32 to vector<1x2x1x8xi32>
    %24 = arith.cmpi eq, %21, %23 : vector<1x2x1x8xi32>
    %c0_i32_7 = arith.constant 0 : i32
    %25 = arith.addi %0, %c0_i32_7 : i32
    %26 = arith.index_cast %25 : i32 to index
    %27 = memref.load %arg1[%26] : memref<2xi32, #tpu.memory_space<smem>>
    %28 = vector.broadcast %27 : i32 to vector<1x2x1x8xi32>
    %29 = arith.select %24, %28, %22 : vector<1x2x1x8xi1>, vector<1x2x1x8xi32>
    %c1_i32 = arith.constant 1 : i32
    %30 = vector.broadcast %c1_i32 : i32 to vector<1x2x1x8xi32>
    %31 = arith.cmpi eq, %21, %30 : vector<1x2x1x8xi32>
    %c1_i32_8 = arith.constant 1 : i32
    %32 = arith.addi %0, %c1_i32_8 : i32
    %33 = arith.index_cast %32 : i32 to index
    %34 = memref.load %arg1[%33] : memref<2xi32, #tpu.memory_space<smem>>
    %35 = vector.broadcast %34 : i32 to vector<1x2x1x8xi32>
    %36 = arith.select %31, %35, %29 : vector<1x2x1x8xi1>, vector<1x2x1x8xi32>
    %37 = arith.cmpi sge, %20, %36 : vector<1x2x1x8xi32>
    %cst_9 = arith.constant -1.000000e+09 : f32
    %38 = vector.shape_cast %37 : vector<1x2x1x8xi1> to vector<1x2x1x8xi1>
    %39 = vector.broadcast %38 : vector<1x2x1x8xi1> to vector<4x2x8x8xi1>
    %40 = vector.broadcast %cst_9 : f32 to vector<4x2x8x8xf32>
    %41 = arith.select %39, %40, %19 : vector<4x2x8x8xi1>, vector<4x2x8x8xf32>
    %cst_10 = arith.constant dense<0xFF800000> : vector<4x2x8xf32>
    %42 = vector.multi_reduction <maximumf>, %41, %cst_10 [3] : vector<4x2x8x8xf32> to vector<4x2x8xf32>
    %43 = vector.shape_cast %42 : vector<4x2x8xf32> to vector<4x2x8x1xf32>
    %44 = vector.broadcast %43 : vector<4x2x8x1xf32> to vector<4x2x8x8xf32>
    %45 = arith.subf %41, %44 : vector<4x2x8x8xf32>
    %46 = math.exp %45 : vector<4x2x8x8xf32>
    %cst_11 = arith.constant dense<0.000000e+00> : vector<4x2x8xf32>
    %47 = vector.multi_reduction <add>, %46, %cst_11 [3] : vector<4x2x8x8xf32> to vector<4x2x8xf32>
    %48 = vector.shape_cast %47 : vector<4x2x8xf32> to vector<4x2x8x1xf32>
    %49 = tpu.reciprocal %48 {approx = true} : vector<4x2x8x1xf32> -> vector<4x2x8x1xf32>
    %50 = vector.broadcast %49 : vector<4x2x8x1xf32> to vector<4x2x8x8xf32>
    %51 = arith.mulf %46, %50 : vector<4x2x8x8xf32>
    %52 = vector.shape_cast %51 : vector<4x2x8x8xf32> to vector<8x8x8xf32>
    %53 = arith.truncf %52 : vector<8x8x8xf32> to vector<8x8x8xbf16>
    "tpu.trace_start"() <{level = 10 : i32, message = "gqk,gkd->gqd"}> : () -> ()
    %cst_12 = arith.constant dense<0.000000e+00> : vector<8x8x8xf32>
    %54 = tpu.matmul %53, %17, %cst_12 {dimension_numbers = #tpu.dot_dimension_numbers<[2], [1], [1], [2], [0, 0, 0, 1, 1, 2], [0], [0]>} : vector<8x8x8xbf16>, vector<8x8x8xbf16>, vector<8x8x8xf32> -> vector<8x8x8xf32>
    "tpu.trace_stop"() : () -> ()
    %55 = vector.shape_cast %54 : vector<8x8x8xf32> to vector<4x16x8xf32>
    %56 = arith.truncf %55 : vector<4x16x8xf32> to vector<4x16x8xbf16>
    %c0_13 = arith.constant 0 : index
    %c0_14 = arith.constant 0 : index
    %c0_15 = arith.constant 0 : index
    %57 = vector.load %arg4[%c0_13, %c0_14, %c0_15] : memref<4x8x32xbf16, #tpu.memory_space<vmem>>, vector<4x8x32xbf16>
    "tpu.trace_start"() <{level = 10 : i32, message = "hrd,hdm->hrm"}> : () -> ()
    %cst_16 = arith.constant dense<0.000000e+00> : vector<4x16x32xf32>
    %58 = tpu.matmul %56, %57, %cst_16 {dimension_numbers = #tpu.dot_dimension_numbers<[2], [1], [1], [2], [0, 0, 0, 1, 1, 2], [0], [0]>} : vector<4x16x8xbf16>, vector<4x8x32xbf16>, vector<4x16x32xf32> -> vector<4x16x32xf32>
    "tpu.trace_stop"() : () -> ()
    %cst_17 = arith.constant dense<0.000000e+00> : vector<16x32xf32>
    %59 = vector.multi_reduction <add>, %58, %cst_17 [0] : vector<4x16x32xf32> to vector<16x32xf32>
    %60 = arith.addf %59, %2 : vector<16x32xf32>
    %cst_18 = arith.constant dense<0.000000e+00> : vector<16xf32>
    %61 = vector.multi_reduction <add>, %60, %cst_18 [1] : vector<16x32xf32> to vector<16xf32>
    %62 = vector.shape_cast %61 : vector<16xf32> to vector<16x1xf32>
    %cst_19 = arith.constant 3.200000e+01 : f32
    %63 = vector.broadcast %cst_19 : f32 to vector<16x1xf32>
    %64 = arith.divf %62, %63 : vector<16x1xf32>
    %65 = vector.broadcast %64 : vector<16x1xf32> to vector<16x32xf32>
    %66 = arith.subf %60, %65 : vector<16x32xf32>
    %67 = arith.mulf %66, %66 : vector<16x32xf32>
    %cst_20 = arith.constant dense<0.000000e+00> : vector<16xf32>
    %68 = vector.multi_reduction <add>, %67, %cst_20 [1] : vector<16x32xf32> to vector<16xf32>
    %69 = vector.shape_cast %68 : vector<16xf32> to vector<16x1xf32>
    %cst_21 = arith.constant 3.200000e+01 : f32
    %70 = vector.broadcast %cst_21 : f32 to vector<16x1xf32>
    %71 = arith.divf %69, %70 : vector<16x1xf32>
    %72 = vector.broadcast %64 : vector<16x1xf32> to vector<16x32xf32>
    %73 = arith.subf %60, %72 : vector<16x32xf32>
    %cst_22 = arith.constant 9.99999974E-6 : f32
    %74 = vector.broadcast %cst_22 : f32 to vector<16x1xf32>
    %75 = arith.addf %71, %74 : vector<16x1xf32>
    %76 = math.rsqrt %75 : vector<16x1xf32>
    %77 = vector.broadcast %76 : vector<16x1xf32> to vector<16x32xf32>
    %78 = arith.mulf %73, %77 : vector<16x32xf32>
    %79 = vector.shape_cast %78 : vector<16x32xf32> to vector<2x8x32xf32>
    %c0_23 = arith.constant 0 : index
    %c0_24 = arith.constant 0 : index
    %c0_25 = arith.constant 0 : index
    %80 = vector.load %arg5[%c0_23, %c0_24, %c0_25] : memref<2x8x32xf32, #tpu.memory_space<vmem>>, vector<2x8x32xf32>
    tpu.vector_store %arg5[%c0_23, %c0_24, %c0_25], %79 {strides = array<i32>} : memref<2x8x32xf32, #tpu.memory_space<vmem>>, vector<2x8x32xf32>,
    %c0_26 = arith.constant 0 : index
    %c0_27 = arith.constant 0 : index
    %c0_28 = arith.constant 0 : index
    %c0_29 = arith.constant 0 : index
    %81 = vector.load %arg6[%c0_26, %c0_27, %c0_28, %c0_29] : memref<4x2x8x8xf32, #tpu.memory_space<vmem>>, vector<4x2x8x8xf32>
    tpu.vector_store %arg6[%c0_26, %c0_27, %c0_28, %c0_29], %51 {strides = array<i32>} : memref<4x2x8x8xf32, #tpu.memory_space<vmem>>, vector<4x2x8x8xf32>,
    return
  }
  func.func @transform_0(%arg0: i32) -> i32 {
    %c0_i32 = arith.constant 0 : i32
    %c0_i32_0 = arith.constant 0 : i32
    return %c0_i32 : i32
  }
  func.func @transform_1(%arg0: i32) -> (i32, i32, i32) {
    %c0_i32 = arith.constant 0 : i32
    %c0_i32_0 = arith.constant 0 : i32
    %c0_i32_1 = arith.constant 0 : i32
    return %arg0, %c0_i32, %c0_i32_0 : i32, i32, i32
  }
  func.func @transform_2(%arg0: i32) -> (i32, i32, i32) {
    %c0_i32 = arith.constant 0 : i32
    %c0_i32_0 = arith.constant 0 : i32
    %c0_i32_1 = arith.constant 0 : i32
    %c0_i32_2 = arith.constant 0 : i32
    return %c0_i32, %c0_i32_0, %c0_i32_1 : i32, i32, i32
  }
  func.func @transform_3(%arg0: i32) -> (i32, i32, i32) {
    %c0_i32 = arith.constant 0 : i32
    %c0_i32_0 = arith.constant 0 : i32
    %c0_i32_1 = arith.constant 0 : i32
    %c0_i32_2 = arith.constant 0 : i32
    return %c0_i32, %c0_i32_0, %c0_i32_1 : i32, i32, i32
  }
  func.func @transform_4(%arg0: i32) -> (i32, i32, i32) {
    %c0_i32 = arith.constant 0 : i32
    %c0_i32_0 = arith.constant 0 : i32
    %c0_i32_1 = arith.constant 0 : i32
    return %arg0, %c0_i32, %c0_i32_0 : i32, i32, i32
  }
  func.func @transform_5(%arg0: i32) -> (i32, i32, i32, i32) {
    %c0_i32 = arith.constant 0 : i32
    %c0_i32_0 = arith.constant 0 : i32
    %c0_i32_1 = arith.constant 0 : i32
    %c0_i32_2 = arith.constant 0 : i32
    return %c0_i32, %arg0, %c0_i32_0, %c0_i32_1 : i32, i32, i32, i32
  }
}

</mosaic_0001>

<llo_original>
// kernel: tpu_custom_call.1
$region0: #{tpu_custom_call.1}
  #allocation0 [shape = 'u32[]', space=smem, size = 0x4, offset = 0x4, fixed_abs, tag = 'smem constant byte address 0x4 - core index']
  #allocation1 [shape = 'u32[144,128]{1,0:T(1,128)}', space=vmem, size = 0x12000, scoped, tag = 'internal scratch']
  %s0 = inlined_call_operand.vmem [shape: s32[2], index: 0, kind: input, shape index: {}]
  %s1 = inlined_call_operand.vmem [shape: f32[2,8,32], index: 1, kind: input, shape index: {}]
  %s2 = inlined_call_operand.vmem [shape: bf16[12,32,8], index: 2, kind: input, shape index: {}]
  %s3 = inlined_call_operand.vmem [shape: bf16[4,8,32], index: 3, kind: input, shape index: {}]
  %s4 = inlined_call_operand.hbm [shape: f32[2,8,32], index: 4, kind: output, shape index: {0}]
  %s5 = inlined_call_operand.hbm [shape: f32[4,2,8,8], index: 5, kind: output, shape index: {1}]
  %6 = xla_tuple %s4, %s5
  %s7 = sld [smem:[#allocation0]]
  $region38: #{tpu_custom_call.1} parent=0
    _
  %s9 = ssub.s32 1, %s7
  %s10 = scalar_select 0, %s9, %s7
  $region1: #{tpu_custom_call.1} parent=0
    #allocation2 [shape = 'u8[512]{0}', space=smem, size = 0x200, scoped, tag = 'input window, operand 0, single buffered']
    #allocation3 [shape = 's32[1]{0}', space=sflag, size = 0x4, scoped, tag = 'scoped memory for tpu_custom_call.1']
    #allocation4 [shape = 's32[1]{0}', space=sflag, size = 0x4, scoped, tag = 'scoped memory for tpu_custom_call.1']
    #allocation5 [shape = 'u8[8192]{0}', space=vmem, size = 0x2000, scoped, tag = 'output window, operand 0, single buffered']
    #allocation6 [shape = 'u8[32768]{0}', space=vmem, size = 0x8000, scoped, tag = 'output window, operand 1, single buffered']
    #allocation7 [shape = 's32[1]{0}', space=sflag, size = 0x4, scoped, tag = 'scoped memory for tpu_custom_call.1']
    %11 = vsyncpa [#allocation4], 0
    %12 = vsyncpa [#allocation3], 0
    %13 = vsyncpa [#allocation7], 0
    // Predicated region
    $region2: #{tpu_custom_call.1} parent=1 // pred_check
      _
    $region3: #{tpu_custom_call.1} parent=1 // pred_check_branch
      %15 = sbr.rel (0) target = $region5
    $region4: #{tpu_custom_call.1} parent=1 // pred_region
      %s17 = ssub.s32 16, 16
      %18 = vsyncadd [#allocation4], %s17
      %s20 = sshll.u32 %s0, 4
      %s21 = int_to_ptr.vmem [resolvable:$true] %s20
      %23 = dma.vmem_to_smem %s21, 16, [#allocation2], [#allocation4]
    $region5: #{tpu_custom_call.1} parent=1 // pred_fallthru
      _
    // Predicated region
    $region6: #{tpu_custom_call.1} parent=1 // pred_check
      _
    $region7: #{tpu_custom_call.1} parent=1 // pred_check_branch
      %25 = sbr.rel (0) target = $region9
    $region8: #{tpu_custom_call.1} parent=1 // pred_region
      _
    $region9: #{tpu_custom_call.1} parent=1 // pred_fallthru
      _
    // Predicated region
    $region10: #{tpu_custom_call.1} parent=1 // pred_check
      _
    $region11: #{tpu_custom_call.1} parent=1 // pred_check_branch
      %27 = sbr.rel (0) target = $region13
    $region12: #{tpu_custom_call.1} parent=1 // pred_region
      _
    $region13: #{tpu_custom_call.1} parent=1 // pred_fallthru
      _
    // Predicated region
    $region14: #{tpu_custom_call.1} parent=1 // pred_check
      _
    $region15: #{tpu_custom_call.1} parent=1 // pred_check_branch
      %29 = sbr.rel (0) target = $region17
    $region16: #{tpu_custom_call.1} parent=1 // pred_region
      _
    $region17: #{tpu_custom_call.1} parent=1 // pred_fallthru
      _
    // Predicated region
    $region18: #{tpu_custom_call.1} parent=1 // pred_check
      _
    $region19: #{tpu_custom_call.1} parent=1 // pred_check_branch
      %31 = sbr.rel (0) target = $region21
    $region20: #{tpu_custom_call.1} parent=1 // pred_region
      %32 = dma.done [#allocation4], 16
    $region21: #{tpu_custom_call.1} parent=1 // pred_fallthru
      _
    %33 = sfence
    %s35 = smul.u32 0, 2
    %v36 = vld [vmem:[%s1] sm:$0xff]
    %v37 = vld [vmem:[%s1 + $0x8] sm:$0xff]
    %v38 = vpack.c.bf16 %v37, %v36
    %v39 = vld [vmem:[%s2] sm:$0xf]
    %v40 = vld [vmem:[%s2 + $0x4] sm:$0xf]
    %v41 = vld [vmem:[%s2 + $0x8] sm:$0xf]
    %v42 = vld [vmem:[%s2 + $0xc] sm:$0xf]
    %v43 = vld [vmem:[%s2 + $0x10] sm:$0xf]
    %v44 = vld [vmem:[%s2 + $0x14] sm:$0xf]
    %v45 = vld [vmem:[%s2 + $0x18] sm:$0xf]
    %v46 = vld [vmem:[%s2 + $0x1c] sm:$0xf]
    %v47 = vld [vmem:[%s2 + $0x20] sm:$0xf]
    %v48 = vld [vmem:[%s2 + $0x24] sm:$0xf]
    %v49 = vld [vmem:[%s2 + $0x28] sm:$0xf]
    %v50 = vld [vmem:[%s2 + $0x2c] sm:$0xf]
    %v51 = vld [vmem:[%s2 + $0x30] sm:$0xf]
    %v52 = vld [vmem:[%s2 + $0x34] sm:$0xf]
    %v53 = vld [vmem:[%s2 + $0x38] sm:$0xf]
    %v54 = vld [vmem:[%s2 + $0x3c] sm:$0xf]
    %v55 = vld [vmem:[%s2 + $0x40] sm:$0xf]
    %v56 = vld [vmem:[%s2 + $0x44] sm:$0xf]
    %v57 = vld [vmem:[%s2 + $0x48] sm:$0xf]
    %v58 = vld [vmem:[%s2 + $0x4c] sm:$0xf]
    %v59 = vld [vmem:[%s2 + $0x50] sm:$0xf]
    %v60 = vld [vmem:[%s2 + $0x54] sm:$0xf]
    %v61 = vld [vmem:[%s2 + $0x58] sm:$0xf]
    %v62 = vld [vmem:[%s2 + $0x5c] sm:$0xf]
    %v63 = vld [vmem:[%s2 + $0x60] sm:$0xf]
    %v64 = vld [vmem:[%s2 + $0x64] sm:$0xf]
    %v65 = vld [vmem:[%s2 + $0x68] sm:$0xf]
    %v66 = vld [vmem:[%s2 + $0x6c] sm:$0xf]
    %v67 = vld [vmem:[%s2 + $0x70] sm:$0xf]
    %v68 = vld [vmem:[%s2 + $0x74] sm:$0xf]
    %v69 = vld [vmem:[%s2 + $0x78] sm:$0xf]
    %v70 = vld [vmem:[%s2 + $0x7c] sm:$0xf]
    %v71 = vld [vmem:[%s2 + $0x80] sm:$0xf]
    %v72 = vld [vmem:[%s2 + $0x84] sm:$0xf]
    %v73 = vld [vmem:[%s2 + $0x88] sm:$0xf]
    %v74 = vld [vmem:[%s2 + $0x8c] sm:$0xf]
    %v75 = vld [vmem:[%s2 + $0x90] sm:$0xf]
    %v76 = vld [vmem:[%s2 + $0x94] sm:$0xf]
    %v77 = vld [vmem:[%s2 + $0x98] sm:$0xf]
    %v78 = vld [vmem:[%s2 + $0x9c] sm:$0xf]
    %v79 = vld [vmem:[%s2 + $0xa0] sm:$0xf]
    %v80 = vld [vmem:[%s2 + $0xa4] sm:$0xf]
    %v81 = vld [vmem:[%s2 + $0xa8] sm:$0xf]
    %v82 = vld [vmem:[%s2 + $0xac] sm:$0xf]
    %v83 = vld [vmem:[%s2 + $0xb0] sm:$0xf]
    %v84 = vld [vmem:[%s2 + $0xb4] sm:$0xf]
    %v85 = vld [vmem:[%s2 + $0xb8] sm:$0xf]
    %v86 = vld [vmem:[%s2 + $0xbc] sm:$0xf]
    %v91 = vunpack.c.l.b16 %v39
    %v92 = vunpack.c.l.b16 %v40
    %v93 = vunpack.c.l.b16 %v41
    %v94 = vunpack.c.l.b16 %v42
    %v95 = vpack.c.b16 %v92, %v91
    %v96 = vpack.c.b16 %v94, %v93
    %vm99 = vcmask 261120
    %v101 = vsel %vm99, %v38, 0
    %103 = vmatprep.subr.bf16.mxu0 0
    %104 = vmatpush1.bf16.msra.mxu0 0
    %105 = vmatprep.subr.bf16.mxu0 0
    %106 = vmatpush1.bf16.msra.mxu0 0
    %107 = vmatprep.subr.bf16.mxu0 0
    %108 = vmatpush1.bf16.msra.mxu0 0
    %109 = vmatprep.subr.bf16.mxu0 0
    %110 = vmatpush1.bf16.msra.mxu0 0
    %111 = vmatprep.subr.bf16.mxu0 0
    %112 = vmatpush1.bf16.msra.mxu0 0
    %113 = vmatprep.subr.bf16.mxu0 0
    %114 = vmatpush1.bf16.msra.mxu0 0
    %115 = vmatprep.subr.bf16.mxu0 0
    %116 = vmatpush1.bf16.msra.mxu0 %v96
    %117 = vmatprep.subr.bf16.mxu0 0
    %118 = vmatpush1.bf16.msra.mxu0 %v95
    %119 = vmatprep.subr.bf16.mxu0 0
    %120 = vmatpush2.bf16.msra.mxu0 0
    %121 = vmatprep.subr.bf16.mxu0 0
    %122 = vmatpush2.bf16.msra.mxu0 0
    %123 = vmatprep.subr.bf16.mxu0 0
    %124 = vmatpush2.bf16.msra.mxu0 0
    %125 = vmatprep.subr.bf16.mxu0 0
    %126 = vmatpush2.bf16.msra.mxu0 0
    %127 = vmatprep.subr.bf16.mxu0 0
    %128 = vmatpush2.bf16.msra.mxu0 0
    %129 = vmatprep.subr.bf16.mxu0 0
    %130 = vmatpush2.bf16.msra.mxu0 0
    %131 = vmatprep.subr.bf16.mxu0 0
    %132 = vmatpush2.bf16.msra.mxu0 0
    %133 = vmatprep.subr.bf16.mxu0 0
    %134 = vmatpush2.bf16.msra.mxu0 0
    %135 = vmatprep.mubr.bf16.mxu0 0
    %136 = vmatmul.mubr.bf16.gmra.mxu0 %v101
    %v137 = vpop.f32.mrf.mxu0
    %v138 = vadd.f32 0.0, %v137
    %v139 = vpop.f32.mrf.mxu0
    %v140 = vpop.f32.mrf.mxu0
    %v141 = vadd.f32 0.0, %v140
    %v142 = vpop.f32.mrf.mxu0
    %143 = vdwg.mxu0
    %v148 = vunpack.c.l.b16 %v43
    %v149 = vunpack.c.l.b16 %v44
    %v150 = vunpack.c.l.b16 %v45
    %v151 = vunpack.c.l.b16 %v46
    %v152 = vpack.c.b16 %v149, %v148
    %v153 = vpack.c.b16 %v151, %v150
    %156 = vmatprep.subr.bf16.mxu0 0
    %157 = vmatpush1.bf16.msra.mxu0 0
    %158 = vmatprep.subr.bf16.mxu0 0
    %159 = vmatpush1.bf16.msra.mxu0 0
    %160 = vmatprep.subr.bf16.mxu0 0
    %161 = vmatpush1.bf16.msra.mxu0 0
    %162 = vmatprep.subr.bf16.mxu0 0
    %163 = vmatpush1.bf16.msra.mxu0 0
    %164 = vmatprep.subr.bf16.mxu0 0
    %165 = vmatpush1.bf16.msra.mxu0 0
    %166 = vmatprep.subr.bf16.mxu0 0
    %167 = vmatpush1.bf16.msra.mxu0 0
    %168 = vmatprep.subr.bf16.mxu0 0
    %169 = vmatpush1.bf16.msra.mxu0 %v153
    %170 = vmatprep.subr.bf16.mxu0 0
    %171 = vmatpush1.bf16.msra.mxu0 %v152
    %172 = vmatprep.subr.bf16.mxu0 0
    %173 = vmatpush2.bf16.msra.mxu0 0
    %174 = vmatprep.subr.bf16.mxu0 0
    %175 = vmatpush2.bf16.msra.mxu0 0
    %176 = vmatprep.subr.bf16.mxu0 0
    %177 = vmatpush2.bf16.msra.mxu0 0
    %178 = vmatprep.subr.bf16.mxu0 0
    %179 = vmatpush2.bf16.msra.mxu0 0
    %180 = vmatprep.subr.bf16.mxu0 0
    %181 = vmatpush2.bf16.msra.mxu0 0
    %182 = vmatprep.subr.bf16.mxu0 0
    %183 = vmatpush2.bf16.msra.mxu0 0
    %184 = vmatprep.subr.bf16.mxu0 0
    %185 = vmatpush2.bf16.msra.mxu0 0
    %186 = vmatprep.subr.bf16.mxu0 0
    %187 = vmatpush2.bf16.msra.mxu0 0
    %188 = vmatprep.mubr.bf16.mxu0 0
    %189 = vmatmul.mubr.bf16.gmra.mxu0 %v101
    %v190 = vpop.f32.mrf.mxu0
    %v191 = vadd.f32 0.0, %v190
    %v192 = vpop.f32.mrf.mxu0
    %v193 = vpop.f32.mrf.mxu0
    %v194 = vadd.f32 0.0, %v193
    %v195 = vpop.f32.mrf.mxu0
    %196 = vdwg.mxu0
    %v201 = vunpack.c.l.b16 %v47
    %v202 = vunpack.c.l.b16 %v48
    %v203 = vunpack.c.l.b16 %v49
    %v204 = vunpack.c.l.b16 %v50
    %v205 = vpack.c.b16 %v202, %v201
    %v206 = vpack.c.b16 %v204, %v203
    %209 = vmatprep.subr.bf16.mxu0 0
    %210 = vmatpush1.bf16.msra.mxu0 0
    %211 = vmatprep.subr.bf16.mxu0 0
    %212 = vmatpush1.bf16.msra.mxu0 0
    %213 = vmatprep.subr.bf16.mxu0 0
    %214 = vmatpush1.bf16.msra.mxu0 0
    %215 = vmatprep.subr.bf16.mxu0 0
    %216 = vmatpush1.bf16.msra.mxu0 0
    %217 = vmatprep.subr.bf16.mxu0 0
    %218 = vmatpush1.bf16.msra.mxu0 0
    %219 = vmatprep.subr.bf16.mxu0 0
    %220 = vmatpush1.bf16.msra.mxu0 0
    %221 = vmatprep.subr.bf16.mxu0 0
    %222 = vmatpush1.bf16.msra.mxu0 %v206
    %223 = vmatprep.subr.bf16.mxu0 0
    %224 = vmatpush1.bf16.msra.mxu0 %v205
    %225 = vmatprep.subr.bf16.mxu0 0
    %226 = vmatpush2.bf16.msra.mxu0 0
    %227 = vmatprep.subr.bf16.mxu0 0
    %228 = vmatpush2.bf16.msra.mxu0 0
    %229 = vmatprep.subr.bf16.mxu0 0
    %230 = vmatpush2.bf16.msra.mxu0 0
    %231 = vmatprep.subr.bf16.mxu0 0
    %232 = vmatpush2.bf16.msra.mxu0 0
    %233 = vmatprep.subr.bf16.mxu0 0
    %234 = vmatpush2.bf16.msra.mxu0 0
    %235 = vmatprep.subr.bf16.mxu0 0
    %236 = vmatpush2.bf16.msra.mxu0 0
    %237 = vmatprep.subr.bf16.mxu0 0
    %238 = vmatpush2.bf16.msra.mxu0 0
    %239 = vmatprep.subr.bf16.mxu0 0
    %240 = vmatpush2.bf16.msra.mxu0 0
    %241 = vmatprep.mubr.bf16.mxu0 0
    %242 = vmatmul.mubr.bf16.gmra.mxu0 %v101
    %v243 = vpop.f32.mrf.mxu0
    %v244 = vadd.f32 0.0, %v243
    %v245 = vpop.f32.mrf.mxu0
    %v246 = vpop.f32.mrf.mxu0
    %v247 = vadd.f32 0.0, %v246
    %v248 = vpop.f32.mrf.mxu0
    %249 = vdwg.mxu0
    %v254 = vunpack.c.l.b16 %v51
    %v255 = vunpack.c.l.b16 %v52
    %v256 = vunpack.c.l.b16 %v53
    %v257 = vunpack.c.l.b16 %v54
    %v258 = vpack.c.b16 %v255, %v254
    %v259 = vpack.c.b16 %v257, %v256
    %262 = vmatprep.subr.bf16.mxu0 0
    %263 = vmatpush1.bf16.msra.mxu0 0
    %264 = vmatprep.subr.bf16.mxu0 0
    %265 = vmatpush1.bf16.msra.mxu0 0
    %266 = vmatprep.subr.bf16.mxu0 0
    %267 = vmatpush1.bf16.msra.mxu0 0
    %268 = vmatprep.subr.bf16.mxu0 0
    %269 = vmatpush1.bf16.msra.mxu0 0
    %270 = vmatprep.subr.bf16.mxu0 0
    %271 = vmatpush1.bf16.msra.mxu0 0
    %272 = vmatprep.subr.bf16.mxu0 0
    %273 = vmatpush1.bf16.msra.mxu0 0
    %274 = vmatprep.subr.bf16.mxu0 0
    %275 = vmatpush1.bf16.msra.mxu0 %v259
    %276 = vmatprep.subr.bf16.mxu0 0
    %277 = vmatpush1.bf16.msra.mxu0 %v258
    %278 = vmatprep.subr.bf16.mxu0 0
    %279 = vmatpush2.bf16.msra.mxu0 0
    %280 = vmatprep.subr.bf16.mxu0 0
    %281 = vmatpush2.bf16.msra.mxu0 0
    %282 = vmatprep.subr.bf16.mxu0 0
    %283 = vmatpush2.bf16.msra.mxu0 0
    %284 = vmatprep.subr.bf16.mxu0 0
    %285 = vmatpush2.bf16.msra.mxu0 0
    %286 = vmatprep.subr.bf16.mxu0 0
    %287 = vmatpush2.bf16.msra.mxu0 0
    %288 = vmatprep.subr.bf16.mxu0 0
    %289 = vmatpush2.bf16.msra.mxu0 0
    %290 = vmatprep.subr.bf16.mxu0 0
    %291 = vmatpush2.bf16.msra.mxu0 0
    %292 = vmatprep.subr.bf16.mxu0 0
    %293 = vmatpush2.bf16.msra.mxu0 0
    %294 = vmatprep.mubr.bf16.mxu0 0
    %295 = vmatmul.mubr.bf16.gmra.mxu0 %v101
    %v296 = vpop.f32.mrf.mxu0
    %v297 = vadd.f32 0.0, %v296
    %v298 = vpop.f32.mrf.mxu0
    %v299 = vpop.f32.mrf.mxu0
    %v300 = vadd.f32 0.0, %v299
    %v301 = vpop.f32.mrf.mxu0
    %302 = vdwg.mxu0
    %v307 = vunpack.c.l.b16 %v55
    %v308 = vunpack.c.l.b16 %v56
    %v309 = vunpack.c.l.b16 %v57
    %v310 = vunpack.c.l.b16 %v58
    %v311 = vpack.c.b16 %v308, %v307
    %v312 = vpack.c.b16 %v310, %v309
    %315 = vmatprep.subr.bf16.mxu0 0
    %316 = vmatpush1.bf16.msra.mxu0 0
    %317 = vmatprep.subr.bf16.mxu0 0
    %318 = vmatpush1.bf16.msra.mxu0 0
    %319 = vmatprep.subr.bf16.mxu0 0
    %320 = vmatpush1.bf16.msra.mxu0 0
    %321 = vmatprep.subr.bf16.mxu0 0
    %322 = vmatpush1.bf16.msra.mxu0 0
    %323 = vmatprep.subr.bf16.mxu0 0
    %324 = vmatpush1.bf16.msra.mxu0 0
    %325 = vmatprep.subr.bf16.mxu0 0
    %326 = vmatpush1.bf16.msra.mxu0 0
    %327 = vmatprep.subr.bf16.mxu0 0
    %328 = vmatpush1.bf16.msra.mxu0 %v312
    %329 = vmatprep.subr.bf16.mxu0 0
    %330 = vmatpush1.bf16.msra.mxu0 %v311
    %331 = vmatprep.subr.bf16.mxu0 0
    %332 = vmatpush2.bf16.msra.mxu0 0
    %333 = vmatprep.subr.bf16.mxu0 0
    %334 = vmatpush2.bf16.msra.mxu0 0
    %335 = vmatprep.subr.bf16.mxu0 0
    %336 = vmatpush2.bf16.msra.mxu0 0
    %337 = vmatprep.subr.bf16.mxu0 0
    %338 = vmatpush2.bf16.msra.mxu0 0
    %339 = vmatprep.subr.bf16.mxu0 0
    %340 = vmatpush2.bf16.msra.mxu0 0
    %341 = vmatprep.subr.bf16.mxu0 0
    %342 = vmatpush2.bf16.msra.mxu0 0
    %343 = vmatprep.subr.bf16.mxu0 0
    %344 = vmatpush2.bf16.msra.mxu0 0
    %345 = vmatprep.subr.bf16.mxu0 0
    %346 = vmatpush2.bf16.msra.mxu0 0
    %347 = vmatprep.mubr.bf16.mxu0 0
    %348 = vmatmul.mubr.bf16.gmra.mxu0 %v101
    %v349 = vpop.f32.mrf.mxu0
    %v350 = vadd.f32 0.0, %v349
    %v351 = vpop.f32.mrf.mxu0
    %v352 = vpop.f32.mrf.mxu0
    %v353 = vadd.f32 0.0, %v352
    %v354 = vpop.f32.mrf.mxu0
    %355 = vdwg.mxu0
    %v360 = vunpack.c.l.b16 %v59
    %v361 = vunpack.c.l.b16 %v60
    %v362 = vunpack.c.l.b16 %v61
    %v363 = vunpack.c.l.b16 %v62
    %v364 = vpack.c.b16 %v361, %v360
    %v365 = vpack.c.b16 %v363, %v362
    %368 = vmatprep.subr.bf16.mxu0 0
    %369 = vmatpush1.bf16.msra.mxu0 0
    %370 = vmatprep.subr.bf16.mxu0 0
    %371 = vmatpush1.bf16.msra.mxu0 0
    %372 = vmatprep.subr.bf16.mxu0 0
    %373 = vmatpush1.bf16.msra.mxu0 0
    %374 = vmatprep.subr.bf16.mxu0 0
    %375 = vmatpush1.bf16.msra.mxu0 0
    %376 = vmatprep.subr.bf16.mxu0 0
    %377 = vmatpush1.bf16.msra.mxu0 0
    %378 = vmatprep.subr.bf16.mxu0 0
    %379 = vmatpush1.bf16.msra.mxu0 0
    %380 = vmatprep.subr.bf16.mxu0 0
    %381 = vmatpush1.bf16.msra.mxu0 %v365
    %382 = vmatprep.subr.bf16.mxu0 0
    %383 = vmatpush1.bf16.msra.mxu0 %v364
    %384 = vmatprep.subr.bf16.mxu0 0
    %385 = vmatpush2.bf16.msra.mxu0 0
    %386 = vmatprep.subr.bf16.mxu0 0
    %387 = vmatpush2.bf16.msra.mxu0 0
    %388 = vmatprep.subr.bf16.mxu0 0
    %389 = vmatpush2.bf16.msra.mxu0 0
    %390 = vmatprep.subr.bf16.mxu0 0
    %391 = vmatpush2.bf16.msra.mxu0 0
    %392 = vmatprep.subr.bf16.mxu0 0
    %393 = vmatpush2.bf16.msra.mxu0 0
    %394 = vmatprep.subr.bf16.mxu0 0
    %395 = vmatpush2.bf16.msra.mxu0 0
    %396 = vmatprep.subr.bf16.mxu0 0
    %397 = vmatpush2.bf16.msra.mxu0 0
    %398 = vmatprep.subr.bf16.mxu0 0
    %399 = vmatpush2.bf16.msra.mxu0 0
    %400 = vmatprep.mubr.bf16.mxu0 0
    %401 = vmatmul.mubr.bf16.gmra.mxu0 %v101
    %v402 = vpop.f32.mrf.mxu0
    %v403 = vadd.f32 0.0, %v402
    %v404 = vpop.f32.mrf.mxu0
    %v405 = vpop.f32.mrf.mxu0
    %v406 = vadd.f32 0.0, %v405
    %v407 = vpop.f32.mrf.mxu0
    %408 = vdwg.mxu0
    %v413 = vunpack.c.l.b16 %v63
    %v414 = vunpack.c.l.b16 %v64
    %v415 = vunpack.c.l.b16 %v65
    %v416 = vunpack.c.l.b16 %v66
    %v417 = vpack.c.b16 %v414, %v413
    %v418 = vpack.c.b16 %v416, %v415
    %421 = vmatprep.subr.bf16.mxu0 0
    %422 = vmatpush1.bf16.msra.mxu0 0
    %423 = vmatprep.subr.bf16.mxu0 0
    %424 = vmatpush1.bf16.msra.mxu0 0
    %425 = vmatprep.subr.bf16.mxu0 0
    %426 = vmatpush1.bf16.msra.mxu0 0
    %427 = vmatprep.subr.bf16.mxu0 0
    %428 = vmatpush1.bf16.msra.mxu0 0
    %429 = vmatprep.subr.bf16.mxu0 0
    %430 = vmatpush1.bf16.msra.mxu0 0
    %431 = vmatprep.subr.bf16.mxu0 0
    %432 = vmatpush1.bf16.msra.mxu0 0
    %433 = vmatprep.subr.bf16.mxu0 0
    %434 = vmatpush1.bf16.msra.mxu0 %v418
    %435 = vmatprep.subr.bf16.mxu0 0
    %436 = vmatpush1.bf16.msra.mxu0 %v417
    %437 = vmatprep.subr.bf16.mxu0 0
    %438 = vmatpush2.bf16.msra.mxu0 0
    %439 = vmatprep.subr.bf16.mxu0 0
    %440 = vmatpush2.bf16.msra.mxu0 0
    %441 = vmatprep.subr.bf16.mxu0 0
    %442 = vmatpush2.bf16.msra.mxu0 0
    %443 = vmatprep.subr.bf16.mxu0 0
    %444 = vmatpush2.bf16.msra.mxu0 0
    %445 = vmatprep.subr.bf16.mxu0 0
    %446 = vmatpush2.bf16.msra.mxu0 0
    %447 = vmatprep.subr.bf16.mxu0 0
    %448 = vmatpush2.bf16.msra.mxu0 0
    %449 = vmatprep.subr.bf16.mxu0 0
    %450 = vmatpush2.bf16.msra.mxu0 0
    %451 = vmatprep.subr.bf16.mxu0 0
    %452 = vmatpush2.bf16.msra.mxu0 0
    %453 = vmatprep.mubr.bf16.mxu0 0
    %454 = vmatmul.mubr.bf16.gmra.mxu0 %v101
    %v455 = vpop.f32.mrf.mxu0
    %v456 = vadd.f32 0.0, %v455
    %v457 = vpop.f32.mrf.mxu0
    %v458 = vpop.f32.mrf.mxu0
    %v459 = vadd.f32 0.0, %v458
    %v460 = vpop.f32.mrf.mxu0
    %461 = vdwg.mxu0
    %v466 = vunpack.c.l.b16 %v67
    %v467 = vunpack.c.l.b16 %v68
    %v468 = vunpack.c.l.b16 %v69
    %v469 = vunpack.c.l.b16 %v70
    %v470 = vpack.c.b16 %v467, %v466
    %v471 = vpack.c.b16 %v469, %v468
    %474 = vmatprep.subr.bf16.mxu0 0
    %475 = vmatpush1.bf16.msra.mxu0 0
    %476 = vmatprep.subr.bf16.mxu0 0
    %477 = vmatpush1.bf16.msra.mxu0 0
    %478 = vmatprep.subr.bf16.mxu0 0
    %479 = vmatpush1.bf16.msra.mxu0 0
    %480 = vmatprep.subr.bf16.mxu0 0
    %481 = vmatpush1.bf16.msra.mxu0 0
    %482 = vmatprep.subr.bf16.mxu0 0
    %483 = vmatpush1.bf16.msra.mxu0 0
    %484 = vmatprep.subr.bf16.mxu0 0
    %485 = vmatpush1.bf16.msra.mxu0 0
    %486 = vmatprep.subr.bf16.mxu0 0
    %487 = vmatpush1.bf16.msra.mxu0 %v471
    %488 = vmatprep.subr.bf16.mxu0 0
    %489 = vmatpush1.bf16.msra.mxu0 %v470
    %490 = vmatprep.subr.bf16.mxu0 0
    %491 = vmatpush2.bf16.msra.mxu0 0
    %492 = vmatprep.subr.bf16.mxu0 0
    %493 = vmatpush2.bf16.msra.mxu0 0
    %494 = vmatprep.subr.bf16.mxu0 0
    %495 = vmatpush2.bf16.msra.mxu0 0
    %496 = vmatprep.subr.bf16.mxu0 0
    %497 = vmatpush2.bf16.msra.mxu0 0
    %498 = vmatprep.subr.bf16.mxu0 0
    %499 = vmatpush2.bf16.msra.mxu0 0
    %500 = vmatprep.subr.bf16.mxu0 0
    %501 = vmatpush2.bf16.msra.mxu0 0
    %502 = vmatprep.subr.bf16.mxu0 0
    %503 = vmatpush2.bf16.msra.mxu0 0
    %504 = vmatprep.subr.bf16.mxu0 0
    %505 = vmatpush2.bf16.msra.mxu0 0
    %506 = vmatprep.mubr.bf16.mxu0 0
    %507 = vmatmul.mubr.bf16.gmra.mxu0 %v101
    %v508 = vpop.f32.mrf.mxu0
    %v509 = vadd.f32 0.0, %v508
    %v510 = vpop.f32.mrf.mxu0
    %v511 = vpop.f32.mrf.mxu0
    %v512 = vadd.f32 0.0, %v511
    %v513 = vpop.f32.mrf.mxu0
    %514 = vdwg.mxu0
    %v519 = vunpack.c.l.b16 %v71
    %v520 = vunpack.c.l.b16 %v72
    %v521 = vunpack.c.l.b16 %v73
    %v522 = vunpack.c.l.b16 %v74
    %v523 = vpack.c.b16 %v520, %v519
    %v524 = vpack.c.b16 %v522, %v521
    %527 = vmatprep.subr.bf16.mxu0 0
    %528 = vmatpush1.bf16.msra.mxu0 0
    %529 = vmatprep.subr.bf16.mxu0 0
    %530 = vmatpush1.bf16.msra.mxu0 0
    %531 = vmatprep.subr.bf16.mxu0 0
    %532 = vmatpush1.bf16.msra.mxu0 0
    %533 = vmatprep.subr.bf16.mxu0 0
    %534 = vmatpush1.bf16.msra.mxu0 0
    %535 = vmatprep.subr.bf16.mxu0 0
    %536 = vmatpush1.bf16.msra.mxu0 0
    %537 = vmatprep.subr.bf16.mxu0 0
    %538 = vmatpush1.bf16.msra.mxu0 0
    %539 = vmatprep.subr.bf16.mxu0 0
    %540 = vmatpush1.bf16.msra.mxu0 %v524
    %541 = vmatprep.subr.bf16.mxu0 0
    %542 = vmatpush1.bf16.msra.mxu0 %v523
    %543 = vmatprep.subr.bf16.mxu0 0
    %544 = vmatpush2.bf16.msra.mxu0 0
    %545 = vmatprep.subr.bf16.mxu0 0
    %546 = vmatpush2.bf16.msra.mxu0 0
    %547 = vmatprep.subr.bf16.mxu0 0
    %548 = vmatpush2.bf16.msra.mxu0 0
    %549 = vmatprep.subr.bf16.mxu0 0
    %550 = vmatpush2.bf16.msra.mxu0 0
    %551 = vmatprep.subr.bf16.mxu0 0
    %552 = vmatpush2.bf16.msra.mxu0 0
    %553 = vmatprep.subr.bf16.mxu0 0
    %554 = vmatpush2.bf16.msra.mxu0 0
    %555 = vmatprep.subr.bf16.mxu0 0
    %556 = vmatpush2.bf16.msra.mxu0 0
    %557 = vmatprep.subr.bf16.mxu0 0
    %558 = vmatpush2.bf16.msra.mxu0 0
    %559 = vmatprep.mubr.bf16.mxu0 0
    %560 = vmatmul.mubr.bf16.gmra.mxu0 %v101
    %v561 = vpop.f32.mrf.mxu0
    %v562 = vadd.f32 0.0, %v561
    %v563 = vpop.f32.mrf.mxu0
    %v564 = vpop.f32.mrf.mxu0
    %v565 = vadd.f32 0.0, %v564
    %v566 = vpop.f32.mrf.mxu0
    %567 = vdwg.mxu0
    %v572 = vunpack.c.l.b16 %v75
    %v573 = vunpack.c.l.b16 %v76
    %v574 = vunpack.c.l.b16 %v77
    %v575 = vunpack.c.l.b16 %v78
    %v576 = vpack.c.b16 %v573, %v572
    %v577 = vpack.c.b16 %v575, %v574
    %580 = vmatprep.subr.bf16.mxu0 0
    %581 = vmatpush1.bf16.msra.mxu0 0
    %582 = vmatprep.subr.bf16.mxu0 0
    %583 = vmatpush1.bf16.msra.mxu0 0
    %584 = vmatprep.subr.bf16.mxu0 0
    %585 = vmatpush1.bf16.msra.mxu0 0
    %586 = vmatprep.subr.bf16.mxu0 0
    %587 = vmatpush1.bf16.msra.mxu0 0
    %588 = vmatprep.subr.bf16.mxu0 0
    %589 = vmatpush1.bf16.msra.mxu0 0
    %590 = vmatprep.subr.bf16.mxu0 0
    %591 = vmatpush1.bf16.msra.mxu0 0
    %592 = vmatprep.subr.bf16.mxu0 0
    %593 = vmatpush1.bf16.msra.mxu0 %v577
    %594 = vmatprep.subr.bf16.mxu0 0
    %595 = vmatpush1.bf16.msra.mxu0 %v576
    %596 = vmatprep.subr.bf16.mxu0 0
    %597 = vmatpush2.bf16.msra.mxu0 0
    %598 = vmatprep.subr.bf16.mxu0 0
    %599 = vmatpush2.bf16.msra.mxu0 0
    %600 = vmatprep.subr.bf16.mxu0 0
    %601 = vmatpush2.bf16.msra.mxu0 0
    %602 = vmatprep.subr.bf16.mxu0 0
    %603 = vmatpush2.bf16.msra.mxu0 0
    %604 = vmatprep.subr.bf16.mxu0 0
    %605 = vmatpush2.bf16.msra.mxu0 0
    %606 = vmatprep.subr.bf16.mxu0 0
    %607 = vmatpush2.bf16.msra.mxu0 0
    %608 = vmatprep.subr.bf16.mxu0 0
    %609 = vmatpush2.bf16.msra.mxu0 0
    %610 = vmatprep.subr.bf16.mxu0 0
    %611 = vmatpush2.bf16.msra.mxu0 0
    %612 = vmatprep.mubr.bf16.mxu0 0
    %613 = vmatmul.mubr.bf16.gmra.mxu0 %v101
    %v614 = vpop.f32.mrf.mxu0
    %v615 = vadd.f32 0.0, %v614
    %v616 = vpop.f32.mrf.mxu0
    %v617 = vpop.f32.mrf.mxu0
    %v618 = vadd.f32 0.0, %v617
    %v619 = vpop.f32.mrf.mxu0
    %620 = vdwg.mxu0
    %v625 = vunpack.c.l.b16 %v79
    %v626 = vunpack.c.l.b16 %v80
    %v627 = vunpack.c.l.b16 %v81
    %v628 = vunpack.c.l.b16 %v82
    %v629 = vpack.c.b16 %v626, %v625
    %v630 = vpack.c.b16 %v628, %v627
    %633 = vmatprep.subr.bf16.mxu0 0
    %634 = vmatpush1.bf16.msra.mxu0 0
    %635 = vmatprep.subr.bf16.mxu0 0
    %636 = vmatpush1.bf16.msra.mxu0 0
    %637 = vmatprep.subr.bf16.mxu0 0
    %638 = vmatpush1.bf16.msra.mxu0 0
    %639 = vmatprep.subr.bf16.mxu0 0
    %640 = vmatpush1.bf16.msra.mxu0 0
    %641 = vmatprep.subr.bf16.mxu0 0
    %642 = vmatpush1.bf16.msra.mxu0 0
    %643 = vmatprep.subr.bf16.mxu0 0
    %644 = vmatpush1.bf16.msra.mxu0 0
    %645 = vmatprep.subr.bf16.mxu0 0
    %646 = vmatpush1.bf16.msra.mxu0 %v630
    %647 = vmatprep.subr.bf16.mxu0 0
    %648 = vmatpush1.bf16.msra.mxu0 %v629
    %649 = vmatprep.subr.bf16.mxu0 0
    %650 = vmatpush2.bf16.msra.mxu0 0
    %651 = vmatprep.subr.bf16.mxu0 0
    %652 = vmatpush2.bf16.msra.mxu0 0
    %653 = vmatprep.subr.bf16.mxu0 0
    %654 = vmatpush2.bf16.msra.mxu0 0
    %655 = vmatprep.subr.bf16.mxu0 0
    %656 = vmatpush2.bf16.msra.mxu0 0
    %657 = vmatprep.subr.bf16.mxu0 0
    %658 = vmatpush2.bf16.msra.mxu0 0
    %659 = vmatprep.subr.bf16.mxu0 0
    %660 = vmatpush2.bf16.msra.mxu0 0
    %661 = vmatprep.subr.bf16.mxu0 0
    %662 = vmatpush2.bf16.msra.mxu0 0
    %663 = vmatprep.subr.bf16.mxu0 0
    %664 = vmatpush2.bf16.msra.mxu0 0
    %665 = vmatprep.mubr.bf16.mxu0 0
    %666 = vmatmul.mubr.bf16.gmra.mxu0 %v101
    %v667 = vpop.f32.mrf.mxu0
    %v668 = vadd.f32 0.0, %v667
    %v669 = vpop.f32.mrf.mxu0
    %v670 = vpop.f32.mrf.mxu0
    %v671 = vadd.f32 0.0, %v670
    %v672 = vpop.f32.mrf.mxu0
    %673 = vdwg.mxu0
    %v678 = vunpack.c.l.b16 %v83
    %v679 = vunpack.c.l.b16 %v84
    %v680 = vunpack.c.l.b16 %v85
    %v681 = vunpack.c.l.b16 %v86
    %v682 = vpack.c.b16 %v679, %v678
    %v683 = vpack.c.b16 %v681, %v680
    %686 = vmatprep.subr.bf16.mxu0 0
    %687 = vmatpush1.bf16.msra.mxu0 0
    %688 = vmatprep.subr.bf16.mxu0 0
    %689 = vmatpush1.bf16.msra.mxu0 0
    %690 = vmatprep.subr.bf16.mxu0 0
    %691 = vmatpush1.bf16.msra.mxu0 0
    %692 = vmatprep.subr.bf16.mxu0 0
    %693 = vmatpush1.bf16.msra.mxu0 0
    %694 = vmatprep.subr.bf16.mxu0 0
    %695 = vmatpush1.bf16.msra.mxu0 0
    %696 = vmatprep.subr.bf16.mxu0 0
    %697 = vmatpush1.bf16.msra.mxu0 0
    %698 = vmatprep.subr.bf16.mxu0 0
    %699 = vmatpush1.bf16.msra.mxu0 %v683
    %700 = vmatprep.subr.bf16.mxu0 0
    %701 = vmatpush1.bf16.msra.mxu0 %v682
    %702 = vmatprep.subr.bf16.mxu0 0
    %703 = vmatpush2.bf16.msra.mxu0 0
    %704 = vmatprep.subr.bf16.mxu0 0
    %705 = vmatpush2.bf16.msra.mxu0 0
    %706 = vmatprep.subr.bf16.mxu0 0
    %707 = vmatpush2.bf16.msra.mxu0 0
    %708 = vmatprep.subr.bf16.mxu0 0
    %709 = vmatpush2.bf16.msra.mxu0 0
    %710 = vmatprep.subr.bf16.mxu0 0
    %711 = vmatpush2.bf16.msra.mxu0 0
    %712 = vmatprep.subr.bf16.mxu0 0
    %713 = vmatpush2.bf16.msra.mxu0 0
    %714 = vmatprep.subr.bf16.mxu0 0
    %715 = vmatpush2.bf16.msra.mxu0 0
    %716 = vmatprep.subr.bf16.mxu0 0
    %717 = vmatpush2.bf16.msra.mxu0 0
    %718 = vmatprep.mubr.bf16.mxu0 0
    %719 = vmatmul.mubr.bf16.gmra.mxu0 %v101
    %v720 = vpop.f32.mrf.mxu0
    %v721 = vadd.f32 0.0, %v720
    %v722 = vpop.f32.mrf.mxu0
    %v723 = vpop.f32.mrf.mxu0
    %v724 = vadd.f32 0.0, %v723
    %v725 = vpop.f32.mrf.mxu0
    %726 = vdwg.mxu0
    %v727 = vpack.c.bf16 %v138, %v138
    %v728 = vpack.c.bf16 %v141, %v141
    %v729 = vpack.c.bf16 %v191, %v191
    %v730 = vpack.c.bf16 %v194, %v194
    %v731 = vpack.c.bf16 %v244, %v244
    %v732 = vpack.c.bf16 %v247, %v247
    %v733 = vpack.c.bf16 %v297, %v297
    %v734 = vpack.c.bf16 %v300, %v300
    %v735 = vpack.c.bf16 %v350, %v350
    %v736 = vpack.c.bf16 %v353, %v353
    %v737 = vpack.c.bf16 %v403, %v403
    %v738 = vpack.c.bf16 %v406, %v406
    %v739 = vpack.c.bf16 %v456, %v456
    %v740 = vpack.c.bf16 %v459, %v459
    %v741 = vpack.c.bf16 %v509, %v509
    %v742 = vpack.c.bf16 %v512, %v512
    %v743 = vpack.c.bf16 %v562, %v562
    %v744 = vpack.c.bf16 %v565, %v565
    %v745 = vpack.c.bf16 %v615, %v615
    %v746 = vpack.c.bf16 %v618, %v618
    %v747 = vpack.c.bf16 %v668, %v668
    %v748 = vpack.c.bf16 %v671, %v671
    %v749 = vpack.c.bf16 %v721, %v721
    %v750 = vpack.c.bf16 %v724, %v724
    %vm751 = vcmask 64512
    %v753 = vsel %vm751, %v727, 0
    %v756 = vsel %vm751, %v735, 0
    %758 = vmatprep.subr.bf16.mxu0 0
    %759 = vmatpush1.bf16.xpose.msra.mxu0 0
    %760 = vmatprep.subr.bf16.mxu0 0
    %761 = vmatpush1.bf16.xpose.msra.mxu0 0
    %762 = vmatprep.subr.bf16.mxu0 0
    %763 = vmatpush1.bf16.xpose.msra.mxu0 0
    %764 = vmatprep.subr.bf16.mxu0 0
    %765 = vmatpush1.bf16.xpose.msra.mxu0 0
    %766 = vmatprep.subr.bf16.mxu0 0
    %767 = vmatpush1.bf16.xpose.msra.mxu0 0
    %768 = vmatprep.subr.bf16.mxu0 0
    %769 = vmatpush1.bf16.xpose.msra.mxu0 0
    %770 = vmatprep.subr.bf16.mxu0 0
    %771 = vmatpush1.bf16.xpose.msra.mxu0 0
    %772 = vmatprep.subr.bf16.mxu0 0
    %773 = vmatpush1.bf16.xpose.msra.mxu0 %v756
    %774 = vmatprep.subr.bf16.mxu0 0
    %775 = vmatpush2.bf16.xpose.msra.mxu0 0
    %776 = vmatprep.subr.bf16.mxu0 0
    %777 = vmatpush2.bf16.xpose.msra.mxu0 0
    %778 = vmatprep.subr.bf16.mxu0 0
    %779 = vmatpush2.bf16.xpose.msra.mxu0 0
    %780 = vmatprep.subr.bf16.mxu0 0
    %781 = vmatpush2.bf16.xpose.msra.mxu0 0
    %782 = vmatprep.subr.bf16.mxu0 0
    %783 = vmatpush2.bf16.xpose.msra.mxu0 0
    %784 = vmatprep.subr.bf16.mxu0 0
    %785 = vmatpush2.bf16.xpose.msra.mxu0 0
    %786 = vmatprep.subr.bf16.mxu0 0
    %787 = vmatpush2.bf16.xpose.msra.mxu0 0
    %788 = vmatprep.subr.bf16.mxu0 0
    %789 = vmatpush2.bf16.xpose.msra.mxu0 0
    %790 = vmatprep.mubr.bf16.mxu0 0
    %791 = vmatmul.mubr.bf16.gmra.mxu0 %v753
    %v792 = vpop.f32.mrf.mxu0
    %v793 = vadd.f32 0.0, %v792
    %v794 = vpop.f32.mrf.mxu0
    %v795 = vpop.f32.mrf.mxu0
    %v796 = vpop.f32.mrf.mxu0
    %797 = vdwg.mxu0
    %v799 = vsel %vm751, %v728, 0
    %v802 = vsel %vm751, %v736, 0
    %804 = vmatprep.subr.bf16.mxu0 0
    %805 = vmatpush1.bf16.xpose.msra.mxu0 0
    %806 = vmatprep.subr.bf16.mxu0 0
    %807 = vmatpush1.bf16.xpose.msra.mxu0 0
    %808 = vmatprep.subr.bf16.mxu0 0
    %809 = vmatpush1.bf16.xpose.msra.mxu0 0
    %810 = vmatprep.subr.bf16.mxu0 0
    %811 = vmatpush1.bf16.xpose.msra.mxu0 0
    %812 = vmatprep.subr.bf16.mxu0 0
    %813 = vmatpush1.bf16.xpose.msra.mxu0 0
    %814 = vmatprep.subr.bf16.mxu0 0
    %815 = vmatpush1.bf16.xpose.msra.mxu0 0
    %816 = vmatprep.subr.bf16.mxu0 0
    %817 = vmatpush1.bf16.xpose.msra.mxu0 0
    %818 = vmatprep.subr.bf16.mxu0 0
    %819 = vmatpush1.bf16.xpose.msra.mxu0 %v802
    %820 = vmatprep.subr.bf16.mxu0 0
    %821 = vmatpush2.bf16.xpose.msra.mxu0 0
    %822 = vmatprep.subr.bf16.mxu0 0
    %823 = vmatpush2.bf16.xpose.msra.mxu0 0
    %824 = vmatprep.subr.bf16.mxu0 0
    %825 = vmatpush2.bf16.xpose.msra.mxu0 0
    %826 = vmatprep.subr.bf16.mxu0 0
    %827 = vmatpush2.bf16.xpose.msra.mxu0 0
    %828 = vmatprep.subr.bf16.mxu0 0
    %829 = vmatpush2.bf16.xpose.msra.mxu0 0
    %830 = vmatprep.subr.bf16.mxu0 0
    %831 = vmatpush2.bf16.xpose.msra.mxu0 0
    %832 = vmatprep.subr.bf16.mxu0 0
    %833 = vmatpush2.bf16.xpose.msra.mxu0 0
    %834 = vmatprep.subr.bf16.mxu0 0
    %835 = vmatpush2.bf16.xpose.msra.mxu0 0
    %836 = vmatprep.mubr.bf16.mxu0 0
    %837 = vmatmul.mubr.bf16.gmra.mxu0 %v799
    %v838 = vpop.f32.mrf.mxu0
    %v839 = vadd.f32 0.0, %v838
    %v840 = vpop.f32.mrf.mxu0
    %v841 = vpop.f32.mrf.mxu0
    %v842 = vpop.f32.mrf.mxu0
    %843 = vdwg.mxu0
    %v845 = vsel %vm751, %v729, 0
    %v848 = vsel %vm751, %v737, 0
    %850 = vmatprep.subr.bf16.mxu0 0
    %851 = vmatpush1.bf16.xpose.msra.mxu0 0
    %852 = vmatprep.subr.bf16.mxu0 0
    %853 = vmatpush1.bf16.xpose.msra.mxu0 0
    %854 = vmatprep.subr.bf16.mxu0 0
    %855 = vmatpush1.bf16.xpose.msra.mxu0 0
    %856 = vmatprep.subr.bf16.mxu0 0
    %857 = vmatpush1.bf16.xpose.msra.mxu0 0
    %858 = vmatprep.subr.bf16.mxu0 0
    %859 = vmatpush1.bf16.xpose.msra.mxu0 0
    %860 = vmatprep.subr.bf16.mxu0 0
    %861 = vmatpush1.bf16.xpose.msra.mxu0 0
    %862 = vmatprep.subr.bf16.mxu0 0
    %863 = vmatpush1.bf16.xpose.msra.mxu0 0
    %864 = vmatprep.subr.bf16.mxu0 0
    %865 = vmatpush1.bf16.xpose.msra.mxu0 %v848
    %866 = vmatprep.subr.bf16.mxu0 0
    %867 = vmatpush2.bf16.xpose.msra.mxu0 0
    %868 = vmatprep.subr.bf16.mxu0 0
    %869 = vmatpush2.bf16.xpose.msra.mxu0 0
    %870 = vmatprep.subr.bf16.mxu0 0
    %871 = vmatpush2.bf16.xpose.msra.mxu0 0
    %872 = vmatprep.subr.bf16.mxu0 0
    %873 = vmatpush2.bf16.xpose.msra.mxu0 0
    %874 = vmatprep.subr.bf16.mxu0 0
    %875 = vmatpush2.bf16.xpose.msra.mxu0 0
    %876 = vmatprep.subr.bf16.mxu0 0
    %877 = vmatpush2.bf16.xpose.msra.mxu0 0
    %878 = vmatprep.subr.bf16.mxu0 0
    %879 = vmatpush2.bf16.xpose.msra.mxu0 0
    %880 = vmatprep.subr.bf16.mxu0 0
    %881 = vmatpush2.bf16.xpose.msra.mxu0 0
    %882 = vmatprep.mubr.bf16.mxu0 0
    %883 = vmatmul.mubr.bf16.gmra.mxu0 %v845
    %v884 = vpop.f32.mrf.mxu0
    %v885 = vadd.f32 0.0, %v884
    %v886 = vpop.f32.mrf.mxu0
    %v887 = vpop.f32.mrf.mxu0
    %v888 = vpop.f32.mrf.mxu0
    %889 = vdwg.mxu0
    %v891 = vsel %vm751, %v730, 0
    %v894 = vsel %vm751, %v738, 0
    %896 = vmatprep.subr.bf16.mxu0 0
    %897 = vmatpush1.bf16.xpose.msra.mxu0 0
    %898 = vmatprep.subr.bf16.mxu0 0
    %899 = vmatpush1.bf16.xpose.msra.mxu0 0
    %900 = vmatprep.subr.bf16.mxu0 0
    %901 = vmatpush1.bf16.xpose.msra.mxu0 0
    %902 = vmatprep.subr.bf16.mxu0 0
    %903 = vmatpush1.bf16.xpose.msra.mxu0 0
    %904 = vmatprep.subr.bf16.mxu0 0
    %905 = vmatpush1.bf16.xpose.msra.mxu0 0
    %906 = vmatprep.subr.bf16.mxu0 0
    %907 = vmatpush1.bf16.xpose.msra.mxu0 0
    %908 = vmatprep.subr.bf16.mxu0 0
    %909 = vmatpush1.bf16.xpose.msra.mxu0 0
    %910 = vmatprep.subr.bf16.mxu0 0
    %911 = vmatpush1.bf16.xpose.msra.mxu0 %v894
    %912 = vmatprep.subr.bf16.mxu0 0
    %913 = vmatpush2.bf16.xpose.msra.mxu0 0
    %914 = vmatprep.subr.bf16.mxu0 0
    %915 = vmatpush2.bf16.xpose.msra.mxu0 0
    %916 = vmatprep.subr.bf16.mxu0 0
    %917 = vmatpush2.bf16.xpose.msra.mxu0 0
    %918 = vmatprep.subr.bf16.mxu0 0
    %919 = vmatpush2.bf16.xpose.msra.mxu0 0
    %920 = vmatprep.subr.bf16.mxu0 0
    %921 = vmatpush2.bf16.xpose.msra.mxu0 0
    %922 = vmatprep.subr.bf16.mxu0 0
    %923 = vmatpush2.bf16.xpose.msra.mxu0 0
    %924 = vmatprep.subr.bf16.mxu0 0
    %925 = vmatpush2.bf16.xpose.msra.mxu0 0
    %926 = vmatprep.subr.bf16.mxu0 0
    %927 = vmatpush2.bf16.xpose.msra.mxu0 0
    %928 = vmatprep.mubr.bf16.mxu0 0
    %929 = vmatmul.mubr.bf16.gmra.mxu0 %v891
    %v930 = vpop.f32.mrf.mxu0
    %v931 = vadd.f32 0.0, %v930
    %v932 = vpop.f32.mrf.mxu0
    %v933 = vpop.f32.mrf.mxu0
    %v934 = vpop.f32.mrf.mxu0
    %935 = vdwg.mxu0
    %v937 = vsel %vm751, %v731, 0
    %v940 = vsel %vm751, %v739, 0
    %942 = vmatprep.subr.bf16.mxu0 0
    %943 = vmatpush1.bf16.xpose.msra.mxu0 0
    %944 = vmatprep.subr.bf16.mxu0 0
    %945 = vmatpush1.bf16.xpose.msra.mxu0 0
    %946 = vmatprep.subr.bf16.mxu0 0
    %947 = vmatpush1.bf16.xpose.msra.mxu0 0
    %948 = vmatprep.subr.bf16.mxu0 0
    %949 = vmatpush1.bf16.xpose.msra.mxu0 0
    %950 = vmatprep.subr.bf16.mxu0 0
    %951 = vmatpush1.bf16.xpose.msra.mxu0 0
    %952 = vmatprep.subr.bf16.mxu0 0
    %953 = vmatpush1.bf16.xpose.msra.mxu0 0
    %954 = vmatprep.subr.bf16.mxu0 0
    %955 = vmatpush1.bf16.xpose.msra.mxu0 0
    %956 = vmatprep.subr.bf16.mxu0 0
    %957 = vmatpush1.bf16.xpose.msra.mxu0 %v940
    %958 = vmatprep.subr.bf16.mxu0 0
    %959 = vmatpush2.bf16.xpose.msra.mxu0 0
    %960 = vmatprep.subr.bf16.mxu0 0
    %961 = vmatpush2.bf16.xpose.msra.mxu0 0
    %962 = vmatprep.subr.bf16.mxu0 0
    %963 = vmatpush2.bf16.xpose.msra.mxu0 0
    %964 = vmatprep.subr.bf16.mxu0 0
    %965 = vmatpush2.bf16.xpose.msra.mxu0 0
    %966 = vmatprep.subr.bf16.mxu0 0
    %967 = vmatpush2.bf16.xpose.msra.mxu0 0
    %968 = vmatprep.subr.bf16.mxu0 0
    %969 = vmatpush2.bf16.xpose.msra.mxu0 0
    %970 = vmatprep.subr.bf16.mxu0 0
    %971 = vmatpush2.bf16.xpose.msra.mxu0 0
    %972 = vmatprep.subr.bf16.mxu0 0
    %973 = vmatpush2.bf16.xpose.msra.mxu0 0
    %974 = vmatprep.mubr.bf16.mxu0 0
    %975 = vmatmul.mubr.bf16.gmra.mxu0 %v937
    %v976 = vpop.f32.mrf.mxu0
    %v977 = vadd.f32 0.0, %v976
    %v978 = vpop.f32.mrf.mxu0
    %v979 = vpop.f32.mrf.mxu0
    %v980 = vpop.f32.mrf.mxu0
    %981 = vdwg.mxu0
    %v983 = vsel %vm751, %v732, 0
    %v986 = vsel %vm751, %v740, 0
    %988 = vmatprep.subr.bf16.mxu0 0
    %989 = vmatpush1.bf16.xpose.msra.mxu0 0
    %990 = vmatprep.subr.bf16.mxu0 0
    %991 = vmatpush1.bf16.xpose.msra.mxu0 0
    %992 = vmatprep.subr.bf16.mxu0 0
    %993 = vmatpush1.bf16.xpose.msra.mxu0 0
    %994 = vmatprep.subr.bf16.mxu0 0
    %995 = vmatpush1.bf16.xpose.msra.mxu0 0
    %996 = vmatprep.subr.bf16.mxu0 0
    %997 = vmatpush1.bf16.xpose.msra.mxu0 0
    %998 = vmatprep.subr.bf16.mxu0 0
    %999 = vmatpush1.bf16.xpose.msra.mxu0 0
    %1000 = vmatprep.subr.bf16.mxu0 0
    %1001 = vmatpush1.bf16.xpose.msra.mxu0 0
    %1002 = vmatprep.subr.bf16.mxu0 0
    %1003 = vmatpush1.bf16.xpose.msra.mxu0 %v986
    %1004 = vmatprep.subr.bf16.mxu0 0
    %1005 = vmatpush2.bf16.xpose.msra.mxu0 0
    %1006 = vmatprep.subr.bf16.mxu0 0
    %1007 = vmatpush2.bf16.xpose.msra.mxu0 0
    %1008 = vmatprep.subr.bf16.mxu0 0
    %1009 = vmatpush2.bf16.xpose.msra.mxu0 0
    %1010 = vmatprep.subr.bf16.mxu0 0
    %1011 = vmatpush2.bf16.xpose.msra.mxu0 0
    %1012 = vmatprep.subr.bf16.mxu0 0
    %1013 = vmatpush2.bf16.xpose.msra.mxu0 0
    %1014 = vmatprep.subr.bf16.mxu0 0
    %1015 = vmatpush2.bf16.xpose.msra.mxu0 0
    %1016 = vmatprep.subr.bf16.mxu0 0
    %1017 = vmatpush2.bf16.xpose.msra.mxu0 0
    %1018 = vmatprep.subr.bf16.mxu0 0
    %1019 = vmatpush2.bf16.xpose.msra.mxu0 0
    %1020 = vmatprep.mubr.bf16.mxu0 0
    %1021 = vmatmul.mubr.bf16.gmra.mxu0 %v983
    %v1022 = vpop.f32.mrf.mxu0
    %v1023 = vadd.f32 0.0, %v1022
    %v1024 = vpop.f32.mrf.mxu0
    %v1025 = vpop.f32.mrf.mxu0
    %v1026 = vpop.f32.mrf.mxu0
    %1027 = vdwg.mxu0
    %v1029 = vsel %vm751, %v733, 0
    %v1032 = vsel %vm751, %v741, 0
    %1034 = vmatprep.subr.bf16.mxu0 0
    %1035 = vmatpush1.bf16.xpose.msra.mxu0 0
    %1036 = vmatprep.subr.bf16.mxu0 0
    %1037 = vmatpush1.bf16.xpose.msra.mxu0 0
    %1038 = vmatprep.subr.bf16.mxu0 0
    %1039 = vmatpush1.bf16.xpose.msra.mxu0 0
    %1040 = vmatprep.subr.bf16.mxu0 0
    %1041 = vmatpush1.bf16.xpose.msra.mxu0 0
    %1042 = vmatprep.subr.bf16.mxu0 0
    %1043 = vmatpush1.bf16.xpose.msra.mxu0 0
    %1044 = vmatprep.subr.bf16.mxu0 0
    %1045 = vmatpush1.bf16.xpose.msra.mxu0 0
    %1046 = vmatprep.subr.bf16.mxu0 0
    %1047 = vmatpush1.bf16.xpose.msra.mxu0 0
    %1048 = vmatprep.subr.bf16.mxu0 0
    %1049 = vmatpush1.bf16.xpose.msra.mxu0 %v1032
    %1050 = vmatprep.subr.bf16.mxu0 0
    %1051 = vmatpush2.bf16.xpose.msra.mxu0 0
    %1052 = vmatprep.subr.bf16.mxu0 0
    %1053 = vmatpush2.bf16.xpose.msra.mxu0 0
    %1054 = vmatprep.subr.bf16.mxu0 0
    %1055 = vmatpush2.bf16.xpose.msra.mxu0 0
    %1056 = vmatprep.subr.bf16.mxu0 0
    %1057 = vmatpush2.bf16.xpose.msra.mxu0 0
    %1058 = vmatprep.subr.bf16.mxu0 0
    %1059 = vmatpush2.bf16.xpose.msra.mxu0 0
    %1060 = vmatprep.subr.bf16.mxu0 0
    %1061 = vmatpush2.bf16.xpose.msra.mxu0 0
    %1062 = vmatprep.subr.bf16.mxu0 0
    %1063 = vmatpush2.bf16.xpose.msra.mxu0 0
    %1064 = vmatprep.subr.bf16.mxu0 0
    %1065 = vmatpush2.bf16.xpose.msra.mxu0 0
    %1066 = vmatprep.mubr.bf16.mxu0 0
    %1067 = vmatmul.mubr.bf16.gmra.mxu0 %v1029
    %v1068 = vpop.f32.mrf.mxu0
    %v1069 = vadd.f32 0.0, %v1068
    %v1070 = vpop.f32.mrf.mxu0
    %v1071 = vpop.f32.mrf.mxu0
    %v1072 = vpop.f32.mrf.mxu0
    %1073 = vdwg.mxu0
    %v1075 = vsel %vm751, %v734, 0
    %v1078 = vsel %vm751, %v742, 0
    %1080 = vmatprep.subr.bf16.mxu0 0
    %1081 = vmatpush1.bf16.xpose.msra.mxu0 0
    %1082 = vmatprep.subr.bf16.mxu0 0
    %1083 = vmatpush1.bf16.xpose.msra.mxu0 0
    %1084 = vmatprep.subr.bf16.mxu0 0
    %1085 = vmatpush1.bf16.xpose.msra.mxu0 0
    %1086 = vmatprep.subr.bf16.mxu0 0
    %1087 = vmatpush1.bf16.xpose.msra.mxu0 0
    %1088 = vmatprep.subr.bf16.mxu0 0
    %1089 = vmatpush1.bf16.xpose.msra.mxu0 0
    %1090 = vmatprep.subr.bf16.mxu0 0
    %1091 = vmatpush1.bf16.xpose.msra.mxu0 0
    %1092 = vmatprep.subr.bf16.mxu0 0
    %1093 = vmatpush1.bf16.xpose.msra.mxu0 0
    %1094 = vmatprep.subr.bf16.mxu0 0
    %1095 = vmatpush1.bf16.xpose.msra.mxu0 %v1078
    %1096 = vmatprep.subr.bf16.mxu0 0
    %1097 = vmatpush2.bf16.xpose.msra.mxu0 0
    %1098 = vmatprep.subr.bf16.mxu0 0
    %1099 = vmatpush2.bf16.xpose.msra.mxu0 0
    %1100 = vmatprep.subr.bf16.mxu0 0
    %1101 = vmatpush2.bf16.xpose.msra.mxu0 0
    %1102 = vmatprep.subr.bf16.mxu0 0
    %1103 = vmatpush2.bf16.xpose.msra.mxu0 0
    %1104 = vmatprep.subr.bf16.mxu0 0
    %1105 = vmatpush2.bf16.xpose.msra.mxu0 0
    %1106 = vmatprep.subr.bf16.mxu0 0
    %1107 = vmatpush2.bf16.xpose.msra.mxu0 0
    %1108 = vmatprep.subr.bf16.mxu0 0
    %1109 = vmatpush2.bf16.xpose.msra.mxu0 0
    %1110 = vmatprep.subr.bf16.mxu0 0
    %1111 = vmatpush2.bf16.xpose.msra.mxu0 0
    %1112 = vmatprep.mubr.bf16.mxu0 0
    %1113 = vmatmul.mubr.bf16.gmra.mxu0 %v1075
    %v1114 = vpop.f32.mrf.mxu0
    %v1115 = vadd.f32 0.0, %v1114
    %v1116 = vpop.f32.mrf.mxu0
    %v1117 = vpop.f32.mrf.mxu0
    %v1118 = vpop.f32.mrf.mxu0
    %1119 = vdwg.mxu0
    %v1120 = vlaneseq
    %v1121 = vand.u32 %v1120, 127
    %s1122 = sld [smem:[#allocation2 + %s35]]
    %v1123 = vstv %s1122
    %s1124 = sadd.s32 %s35, 1
    %s1125 = sld [smem:[#allocation2 + %s1124]]
    %v1126 = vstv %s1125
    %vm1127 = vcmp.ge.s32.totalorder %v1121, %v1123
    %vm1128 = vcmp.ge.s32.totalorder %v1121, %v1126
    %v1129 = vsel %vm1127, 1, 0
    %v1130 = vsel %vm1128, 1, 0
    %vm1131 = vcmp.eq.s32.totalorder %v1129, 1
    %vm1132 = vcmp.eq.s32.totalorder %v1130, 1
    %v1133 = vsel %vm1131, -1e+09, %v793
    %v1134 = vsel %vm1132, -1e+09, %v839
    %v1135 = vsel %vm1131, -1e+09, %v885
    %v1136 = vsel %vm1132, -1e+09, %v931
    %v1137 = vsel %vm1131, -1e+09, %v977
    %v1138 = vsel %vm1132, -1e+09, %v1023
    %v1139 = vsel %vm1131, -1e+09, %v1069
    %v1140 = vsel %vm1132, -1e+09, %v1115
    %v1141 = vsel %vm751, %v1133, -inf
    %1142 = vmax.xlane.f32.xlu0 %v1141
    %v1143 = vpop.xlane.xlu0 %1142
    %v1144 = vsel %vm751, %v1134, -inf
    %1145 = vmax.xlane.f32.xlu0 %v1144
    %v1146 = vpop.xlane.xlu0 %1145
    %v1147 = vsel %vm751, %v1135, -inf
    %1148 = vmax.xlane.f32.xlu0 %v1147
    %v1149 = vpop.xlane.xlu0 %1148
    %v1150 = vsel %vm751, %v1136, -inf
    %1151 = vmax.xlane.f32.xlu0 %v1150
    %v1152 = vpop.xlane.xlu0 %1151
    %v1153 = vsel %vm751, %v1137, -inf
    %1154 = vmax.xlane.f32.xlu0 %v1153
    %v1155 = vpop.xlane.xlu0 %1154
    %v1156 = vsel %vm751, %v1138, -inf
    %1157 = vmax.xlane.f32.xlu0 %v1156
    %v1158 = vpop.xlane.xlu0 %1157
    %v1159 = vsel %vm751, %v1139, -inf
    %1160 = vmax.xlane.f32.xlu0 %v1159
    %v1161 = vpop.xlane.xlu0 %1160
    %v1162 = vsel %vm751, %v1140, -inf
    %1163 = vmax.xlane.f32.xlu0 %v1162
    %v1164 = vpop.xlane.xlu0 %1163
    %v1165 = vsub.f32 %v1133, %v1143
    %v1166 = vsub.f32 %v1134, %v1146
    %v1167 = vsub.f32 %v1135, %v1149
    %v1168 = vsub.f32 %v1136, %v1152
    %v1169 = vsub.f32 %v1137, %v1155
    %v1170 = vsub.f32 %v1138, %v1158
    %v1171 = vsub.f32 %v1139, %v1161
    %v1172 = vsub.f32 %v1140, %v1164
    %v1173 = vmul.f32 %v1165, 1.442695
    %v1174 = vpow.pop %v1173
    %v1175 = vmul.f32 %v1166, 1.442695
    %v1176 = vpow.pop %v1175
    %v1177 = vmul.f32 %v1167, 1.442695
    %v1178 = vpow.pop %v1177
    %v1179 = vmul.f32 %v1168, 1.442695
    %v1180 = vpow.pop %v1179
    %v1181 = vmul.f32 %v1169, 1.442695
    %v1182 = vpow.pop %v1181
    %v1183 = vmul.f32 %v1170, 1.442695
    %v1184 = vpow.pop %v1183
    %v1185 = vmul.f32 %v1171, 1.442695
    %v1186 = vpow.pop %v1185
    %v1187 = vmul.f32 %v1172, 1.442695
    %v1188 = vpow.pop %v1187
    %v1189 = vsel %vm751, %v1174, 0.0
    %1190 = vadd.xlane.f32.xlu0 %v1189
    %v1191 = vpop.xlane.xlu0 %1190
    %v1192 = vsel %vm751, %v1176, 0.0
    %1193 = vadd.xlane.f32.xlu0 %v1192
    %v1194 = vpop.xlane.xlu0 %1193
    %v1195 = vsel %vm751, %v1178, 0.0
    %1196 = vadd.xlane.f32.xlu0 %v1195
    %v1197 = vpop.xlane.xlu0 %1196
    %v1198 = vsel %vm751, %v1180, 0.0
    %1199 = vadd.xlane.f32.xlu0 %v1198
    %v1200 = vpop.xlane.xlu0 %1199
    %v1201 = vsel %vm751, %v1182, 0.0
    %1202 = vadd.xlane.f32.xlu0 %v1201
    %v1203 = vpop.xlane.xlu0 %1202
    %v1204 = vsel %vm751, %v1184, 0.0
    %1205 = vadd.xlane.f32.xlu0 %v1204
    %v1206 = vpop.xlane.xlu0 %1205
    %v1207 = vsel %vm751, %v1186, 0.0
    %1208 = vadd.xlane.f32.xlu0 %v1207
    %v1209 = vpop.xlane.xlu0 %1208
    %v1210 = vsel %vm751, %v1188, 0.0
    %1211 = vadd.xlane.f32.xlu0 %v1210
    %v1212 = vpop.xlane.xlu0 %1211
    %v1213 = vrcp.pop %v1191
    %v1214 = vrcp.pop %v1194
    %v1215 = vrcp.pop %v1197
    %v1216 = vrcp.pop %v1200
    %v1217 = vrcp.pop %v1203
    %v1218 = vrcp.pop %v1206
    %v1219 = vrcp.pop %v1209
    %v1220 = vrcp.pop %v1212
    %v1221 = vmul.f32 %v1174, %v1213
    %v1222 = vmul.f32 %v1176, %v1214
    %v1223 = vmul.f32 %v1178, %v1215
    %v1224 = vmul.f32 %v1180, %v1216
    %v1225 = vmul.f32 %v1182, %v1217
    %v1226 = vmul.f32 %v1184, %v1218
    %v1227 = vmul.f32 %v1186, %v1219
    %v1228 = vmul.f32 %v1188, %v1220
    %v1229 = vpack.c.bf16 %v1221, %v1221
    %v1230 = vpack.c.bf16 %v1222, %v1222
    %v1231 = vpack.c.bf16 %v1223, %v1223
    %v1232 = vpack.c.bf16 %v1224, %v1224
    %v1233 = vpack.c.bf16 %v1225, %v1225
    %v1234 = vpack.c.bf16 %v1226, %v1226
    %v1235 = vpack.c.bf16 %v1227, %v1227
    %v1236 = vpack.c.bf16 %v1228, %v1228
    %v1238 = vsel %vm751, %v1229, 0
    %vm1240 = vcmask 1043456
    %v1242 = vsel %vm1240, %v743, 0
    %1244 = vmatprep.subr.bf16.mxu0 0
    %1245 = vmatpush1.bf16.msra.mxu0 0
    %1246 = vmatprep.subr.bf16.mxu0 0
    %1247 = vmatpush1.bf16.msra.mxu0 0
    %1248 = vmatprep.subr.bf16.mxu0 0
    %1249 = vmatpush1.bf16.msra.mxu0 0
    %1250 = vmatprep.subr.bf16.mxu0 0
    %1251 = vmatpush1.bf16.msra.mxu0 0
    %1252 = vmatprep.subr.bf16.mxu0 0
    %1253 = vmatpush1.bf16.msra.mxu0 0
    %1254 = vmatprep.subr.bf16.mxu0 0
    %1255 = vmatpush1.bf16.msra.mxu0 0
    %1256 = vmatprep.subr.bf16.mxu0 0
    %1257 = vmatpush1.bf16.msra.mxu0 0
    %1258 = vmatprep.subr.bf16.mxu0 0
    %1259 = vmatpush1.bf16.msra.mxu0 %v1242
    %1260 = vmatprep.subr.bf16.mxu0 0
    %1261 = vmatpush2.bf16.msra.mxu0 0
    %1262 = vmatprep.subr.bf16.mxu0 0
    %1263 = vmatpush2.bf16.msra.mxu0 0
    %1264 = vmatprep.subr.bf16.mxu0 0
    %1265 = vmatpush2.bf16.msra.mxu0 0
    %1266 = vmatprep.subr.bf16.mxu0 0
    %1267 = vmatpush2.bf16.msra.mxu0 0
    %1268 = vmatprep.subr.bf16.mxu0 0
    %1269 = vmatpush2.bf16.msra.mxu0 0
    %1270 = vmatprep.subr.bf16.mxu0 0
    %1271 = vmatpush2.bf16.msra.mxu0 0
    %1272 = vmatprep.subr.bf16.mxu0 0
    %1273 = vmatpush2.bf16.msra.mxu0 0
    %1274 = vmatprep.subr.bf16.mxu0 0
    %1275 = vmatpush2.bf16.msra.mxu0 0
    %1276 = vmatprep.mubr.bf16.mxu0 0
    %1277 = vmatmul.mubr.bf16.gmra.mxu0 %v1238
    %v1278 = vpop.f32.mrf.mxu0
    %v1279 = vadd.f32 0.0, %v1278
    %v1280 = vpop.f32.mrf.mxu0
    %v1281 = vpop.f32.mrf.mxu0
    %v1282 = vpop.f32.mrf.mxu0
    %1283 = vdwg.mxu0
    %v1285 = vsel %vm751, %v1230, 0
    %v1288 = vsel %vm1240, %v744, 0
    %1290 = vmatprep.subr.bf16.mxu0 0
    %1291 = vmatpush1.bf16.msra.mxu0 0
    %1292 = vmatprep.subr.bf16.mxu0 0
    %1293 = vmatpush1.bf16.msra.mxu0 0
    %1294 = vmatprep.subr.bf16.mxu0 0
    %1295 = vmatpush1.bf16.msra.mxu0 0
    %1296 = vmatprep.subr.bf16.mxu0 0
    %1297 = vmatpush1.bf16.msra.mxu0 0
    %1298 = vmatprep.subr.bf16.mxu0 0
    %1299 = vmatpush1.bf16.msra.mxu0 0
    %1300 = vmatprep.subr.bf16.mxu0 0
    %1301 = vmatpush1.bf16.msra.mxu0 0
    %1302 = vmatprep.subr.bf16.mxu0 0
    %1303 = vmatpush1.bf16.msra.mxu0 0
    %1304 = vmatprep.subr.bf16.mxu0 0
    %1305 = vmatpush1.bf16.msra.mxu0 %v1288
    %1306 = vmatprep.subr.bf16.mxu0 0
    %1307 = vmatpush2.bf16.msra.mxu0 0
    %1308 = vmatprep.subr.bf16.mxu0 0
    %1309 = vmatpush2.bf16.msra.mxu0 0
    %1310 = vmatprep.subr.bf16.mxu0 0
    %1311 = vmatpush2.bf16.msra.mxu0 0
    %1312 = vmatprep.subr.bf16.mxu0 0
    %1313 = vmatpush2.bf16.msra.mxu0 0
    %1314 = vmatprep.subr.bf16.mxu0 0
    %1315 = vmatpush2.bf16.msra.mxu0 0
    %1316 = vmatprep.subr.bf16.mxu0 0
    %1317 = vmatpush2.bf16.msra.mxu0 0
    %1318 = vmatprep.subr.bf16.mxu0 0
    %1319 = vmatpush2.bf16.msra.mxu0 0
    %1320 = vmatprep.subr.bf16.mxu0 0
    %1321 = vmatpush2.bf16.msra.mxu0 0
    %1322 = vmatprep.mubr.bf16.mxu0 0
    %1323 = vmatmul.mubr.bf16.gmra.mxu0 %v1285
    %v1324 = vpop.f32.mrf.mxu0
    %v1325 = vadd.f32 0.0, %v1324
    %v1326 = vpop.f32.mrf.mxu0
    %v1327 = vpop.f32.mrf.mxu0
    %v1328 = vpop.f32.mrf.mxu0
    %1329 = vdwg.mxu0
    %v1331 = vsel %vm751, %v1231, 0
    %v1334 = vsel %vm1240, %v745, 0
    %1336 = vmatprep.subr.bf16.mxu0 0
    %1337 = vmatpush1.bf16.msra.mxu0 0
    %1338 = vmatprep.subr.bf16.mxu0 0
    %1339 = vmatpush1.bf16.msra.mxu0 0
    %1340 = vmatprep.subr.bf16.mxu0 0
    %1341 = vmatpush1.bf16.msra.mxu0 0
    %1342 = vmatprep.subr.bf16.mxu0 0
    %1343 = vmatpush1.bf16.msra.mxu0 0
    %1344 = vmatprep.subr.bf16.mxu0 0
    %1345 = vmatpush1.bf16.msra.mxu0 0
    %1346 = vmatprep.subr.bf16.mxu0 0
    %1347 = vmatpush1.bf16.msra.mxu0 0
    %1348 = vmatprep.subr.bf16.mxu0 0
    %1349 = vmatpush1.bf16.msra.mxu0 0
    %1350 = vmatprep.subr.bf16.mxu0 0
    %1351 = vmatpush1.bf16.msra.mxu0 %v1334
    %1352 = vmatprep.subr.bf16.mxu0 0
    %1353 = vmatpush2.bf16.msra.mxu0 0
    %1354 = vmatprep.subr.bf16.mxu0 0
    %1355 = vmatpush2.bf16.msra.mxu0 0
    %1356 = vmatprep.subr.bf16.mxu0 0
    %1357 = vmatpush2.bf16.msra.mxu0 0
    %1358 = vmatprep.subr.bf16.mxu0 0
    %1359 = vmatpush2.bf16.msra.mxu0 0
    %1360 = vmatprep.subr.bf16.mxu0 0
    %1361 = vmatpush2.bf16.msra.mxu0 0
    %1362 = vmatprep.subr.bf16.mxu0 0
    %1363 = vmatpush2.bf16.msra.mxu0 0
    %1364 = vmatprep.subr.bf16.mxu0 0
    %1365 = vmatpush2.bf16.msra.mxu0 0
    %1366 = vmatprep.subr.bf16.mxu0 0
    %1367 = vmatpush2.bf16.msra.mxu0 0
    %1368 = vmatprep.mubr.bf16.mxu0 0
    %1369 = vmatmul.mubr.bf16.gmra.mxu0 %v1331
    %v1370 = vpop.f32.mrf.mxu0
    %v1371 = vadd.f32 0.0, %v1370
    %v1372 = vpop.f32.mrf.mxu0
    %v1373 = vpop.f32.mrf.mxu0
    %v1374 = vpop.f32.mrf.mxu0
    %1375 = vdwg.mxu0
    %v1377 = vsel %vm751, %v1232, 0
    %v1380 = vsel %vm1240, %v746, 0
    %1382 = vmatprep.subr.bf16.mxu0 0
    %1383 = vmatpush1.bf16.msra.mxu0 0
    %1384 = vmatprep.subr.bf16.mxu0 0
    %1385 = vmatpush1.bf16.msra.mxu0 0
    %1386 = vmatprep.subr.bf16.mxu0 0
    %1387 = vmatpush1.bf16.msra.mxu0 0
    %1388 = vmatprep.subr.bf16.mxu0 0
    %1389 = vmatpush1.bf16.msra.mxu0 0
    %1390 = vmatprep.subr.bf16.mxu0 0
    %1391 = vmatpush1.bf16.msra.mxu0 0
    %1392 = vmatprep.subr.bf16.mxu0 0
    %1393 = vmatpush1.bf16.msra.mxu0 0
    %1394 = vmatprep.subr.bf16.mxu0 0
    %1395 = vmatpush1.bf16.msra.mxu0 0
    %1396 = vmatprep.subr.bf16.mxu0 0
    %1397 = vmatpush1.bf16.msra.mxu0 %v1380
    %1398 = vmatprep.subr.bf16.mxu0 0
    %1399 = vmatpush2.bf16.msra.mxu0 0
    %1400 = vmatprep.subr.bf16.mxu0 0
    %1401 = vmatpush2.bf16.msra.mxu0 0
    %1402 = vmatprep.subr.bf16.mxu0 0
    %1403 = vmatpush2.bf16.msra.mxu0 0
    %1404 = vmatprep.subr.bf16.mxu0 0
    %1405 = vmatpush2.bf16.msra.mxu0 0
    %1406 = vmatprep.subr.bf16.mxu0 0
    %1407 = vmatpush2.bf16.msra.mxu0 0
    %1408 = vmatprep.subr.bf16.mxu0 0
    %1409 = vmatpush2.bf16.msra.mxu0 0
    %1410 = vmatprep.subr.bf16.mxu0 0
    %1411 = vmatpush2.bf16.msra.mxu0 0
    %1412 = vmatprep.subr.bf16.mxu0 0
    %1413 = vmatpush2.bf16.msra.mxu0 0
    %1414 = vmatprep.mubr.bf16.mxu0 0
    %1415 = vmatmul.mubr.bf16.gmra.mxu0 %v1377
    %v1416 = vpop.f32.mrf.mxu0
    %v1417 = vadd.f32 0.0, %v1416
    %v1418 = vpop.f32.mrf.mxu0
    %v1419 = vpop.f32.mrf.mxu0
    %v1420 = vpop.f32.mrf.mxu0
    %1421 = vdwg.mxu0
    %v1423 = vsel %vm751, %v1233, 0
    %v1426 = vsel %vm1240, %v747, 0
    %1428 = vmatprep.subr.bf16.mxu0 0
    %1429 = vmatpush1.bf16.msra.mxu0 0
    %1430 = vmatprep.subr.bf16.mxu0 0
    %1431 = vmatpush1.bf16.msra.mxu0 0
    %1432 = vmatprep.subr.bf16.mxu0 0
    %1433 = vmatpush1.bf16.msra.mxu0 0
    %1434 = vmatprep.subr.bf16.mxu0 0
    %1435 = vmatpush1.bf16.msra.mxu0 0
    %1436 = vmatprep.subr.bf16.mxu0 0
    %1437 = vmatpush1.bf16.msra.mxu0 0
    %1438 = vmatprep.subr.bf16.mxu0 0
    %1439 = vmatpush1.bf16.msra.mxu0 0
    %1440 = vmatprep.subr.bf16.mxu0 0
    %1441 = vmatpush1.bf16.msra.mxu0 0
    %1442 = vmatprep.subr.bf16.mxu0 0
    %1443 = vmatpush1.bf16.msra.mxu0 %v1426
    %1444 = vmatprep.subr.bf16.mxu0 0
    %1445 = vmatpush2.bf16.msra.mxu0 0
    %1446 = vmatprep.subr.bf16.mxu0 0
    %1447 = vmatpush2.bf16.msra.mxu0 0
    %1448 = vmatprep.subr.bf16.mxu0 0
    %1449 = vmatpush2.bf16.msra.mxu0 0
    %1450 = vmatprep.subr.bf16.mxu0 0
    %1451 = vmatpush2.bf16.msra.mxu0 0
    %1452 = vmatprep.subr.bf16.mxu0 0
    %1453 = vmatpush2.bf16.msra.mxu0 0
    %1454 = vmatprep.subr.bf16.mxu0 0
    %1455 = vmatpush2.bf16.msra.mxu0 0
    %1456 = vmatprep.subr.bf16.mxu0 0
    %1457 = vmatpush2.bf16.msra.mxu0 0
    %1458 = vmatprep.subr.bf16.mxu0 0
    %1459 = vmatpush2.bf16.msra.mxu0 0
    %1460 = vmatprep.mubr.bf16.mxu0 0
    %1461 = vmatmul.mubr.bf16.gmra.mxu0 %v1423
    %v1462 = vpop.f32.mrf.mxu0
    %v1463 = vadd.f32 0.0, %v1462
    %v1464 = vpop.f32.mrf.mxu0
    %v1465 = vpop.f32.mrf.mxu0
    %v1466 = vpop.f32.mrf.mxu0
    %1467 = vdwg.mxu0
    %v1469 = vsel %vm751, %v1234, 0
    %v1472 = vsel %vm1240, %v748, 0
    %1474 = vmatprep.subr.bf16.mxu0 0
    %1475 = vmatpush1.bf16.msra.mxu0 0
    %1476 = vmatprep.subr.bf16.mxu0 0
    %1477 = vmatpush1.bf16.msra.mxu0 0
    %1478 = vmatprep.subr.bf16.mxu0 0
    %1479 = vmatpush1.bf16.msra.mxu0 0
    %1480 = vmatprep.subr.bf16.mxu0 0
    %1481 = vmatpush1.bf16.msra.mxu0 0
    %1482 = vmatprep.subr.bf16.mxu0 0
    %1483 = vmatpush1.bf16.msra.mxu0 0
    %1484 = vmatprep.subr.bf16.mxu0 0
    %1485 = vmatpush1.bf16.msra.mxu0 0
    %1486 = vmatprep.subr.bf16.mxu0 0
    %1487 = vmatpush1.bf16.msra.mxu0 0
    %1488 = vmatprep.subr.bf16.mxu0 0
    %1489 = vmatpush1.bf16.msra.mxu0 %v1472
    %1490 = vmatprep.subr.bf16.mxu0 0
    %1491 = vmatpush2.bf16.msra.mxu0 0
    %1492 = vmatprep.subr.bf16.mxu0 0
    %1493 = vmatpush2.bf16.msra.mxu0 0
    %1494 = vmatprep.subr.bf16.mxu0 0
    %1495 = vmatpush2.bf16.msra.mxu0 0
    %1496 = vmatprep.subr.bf16.mxu0 0
    %1497 = vmatpush2.bf16.msra.mxu0 0
    %1498 = vmatprep.subr.bf16.mxu0 0
    %1499 = vmatpush2.bf16.msra.mxu0 0
    %1500 = vmatprep.subr.bf16.mxu0 0
    %1501 = vmatpush2.bf16.msra.mxu0 0
    %1502 = vmatprep.subr.bf16.mxu0 0
    %1503 = vmatpush2.bf16.msra.mxu0 0
    %1504 = vmatprep.subr.bf16.mxu0 0
    %1505 = vmatpush2.bf16.msra.mxu0 0
    %1506 = vmatprep.mubr.bf16.mxu0 0
    %1507 = vmatmul.mubr.bf16.gmra.mxu0 %v1469
    %v1508 = vpop.f32.mrf.mxu0
    %v1509 = vadd.f32 0.0, %v1508
    %v1510 = vpop.f32.mrf.mxu0
    %v1511 = vpop.f32.mrf.mxu0
    %v1512 = vpop.f32.mrf.mxu0
    %1513 = vdwg.mxu0
    %v1515 = vsel %vm751, %v1235, 0
    %v1518 = vsel %vm1240, %v749, 0
    %1520 = vmatprep.subr.bf16.mxu0 0
    %1521 = vmatpush1.bf16.msra.mxu0 0
    %1522 = vmatprep.subr.bf16.mxu0 0
    %1523 = vmatpush1.bf16.msra.mxu0 0
    %1524 = vmatprep.subr.bf16.mxu0 0
    %1525 = vmatpush1.bf16.msra.mxu0 0
    %1526 = vmatprep.subr.bf16.mxu0 0
    %1527 = vmatpush1.bf16.msra.mxu0 0
    %1528 = vmatprep.subr.bf16.mxu0 0
    %1529 = vmatpush1.bf16.msra.mxu0 0
    %1530 = vmatprep.subr.bf16.mxu0 0
    %1531 = vmatpush1.bf16.msra.mxu0 0
    %1532 = vmatprep.subr.bf16.mxu0 0
    %1533 = vmatpush1.bf16.msra.mxu0 0
    %1534 = vmatprep.subr.bf16.mxu0 0
    %1535 = vmatpush1.bf16.msra.mxu0 %v1518
    %1536 = vmatprep.subr.bf16.mxu0 0
    %1537 = vmatpush2.bf16.msra.mxu0 0
    %1538 = vmatprep.subr.bf16.mxu0 0
    %1539 = vmatpush2.bf16.msra.mxu0 0
    %1540 = vmatprep.subr.bf16.mxu0 0
    %1541 = vmatpush2.bf16.msra.mxu0 0
    %1542 = vmatprep.subr.bf16.mxu0 0
    %1543 = vmatpush2.bf16.msra.mxu0 0
    %1544 = vmatprep.subr.bf16.mxu0 0
    %1545 = vmatpush2.bf16.msra.mxu0 0
    %1546 = vmatprep.subr.bf16.mxu0 0
    %1547 = vmatpush2.bf16.msra.mxu0 0
    %1548 = vmatprep.subr.bf16.mxu0 0
    %1549 = vmatpush2.bf16.msra.mxu0 0
    %1550 = vmatprep.subr.bf16.mxu0 0
    %1551 = vmatpush2.bf16.msra.mxu0 0
    %1552 = vmatprep.mubr.bf16.mxu0 0
    %1553 = vmatmul.mubr.bf16.gmra.mxu0 %v1515
    %v1554 = vpop.f32.mrf.mxu0
    %v1555 = vadd.f32 0.0, %v1554
    %v1556 = vpop.f32.mrf.mxu0
    %v1557 = vpop.f32.mrf.mxu0
    %v1558 = vpop.f32.mrf.mxu0
    %1559 = vdwg.mxu0
    %v1561 = vsel %vm751, %v1236, 0
    %v1564 = vsel %vm1240, %v750, 0
    %1566 = vmatprep.subr.bf16.mxu0 0
    %1567 = vmatpush1.bf16.msra.mxu0 0
    %1568 = vmatprep.subr.bf16.mxu0 0
    %1569 = vmatpush1.bf16.msra.mxu0 0
    %1570 = vmatprep.subr.bf16.mxu0 0
    %1571 = vmatpush1.bf16.msra.mxu0 0
    %1572 = vmatprep.subr.bf16.mxu0 0
    %1573 = vmatpush1.bf16.msra.mxu0 0
    %1574 = vmatprep.subr.bf16.mxu0 0
    %1575 = vmatpush1.bf16.msra.mxu0 0
    %1576 = vmatprep.subr.bf16.mxu0 0
    %1577 = vmatpush1.bf16.msra.mxu0 0
    %1578 = vmatprep.subr.bf16.mxu0 0
    %1579 = vmatpush1.bf16.msra.mxu0 0
    %1580 = vmatprep.subr.bf16.mxu0 0
    %1581 = vmatpush1.bf16.msra.mxu0 %v1564
    %1582 = vmatprep.subr.bf16.mxu0 0
    %1583 = vmatpush2.bf16.msra.mxu0 0
    %1584 = vmatprep.subr.bf16.mxu0 0
    %1585 = vmatpush2.bf16.msra.mxu0 0
    %1586 = vmatprep.subr.bf16.mxu0 0
    %1587 = vmatpush2.bf16.msra.mxu0 0
    %1588 = vmatprep.subr.bf16.mxu0 0
    %1589 = vmatpush2.bf16.msra.mxu0 0
    %1590 = vmatprep.subr.bf16.mxu0 0
    %1591 = vmatpush2.bf16.msra.mxu0 0
    %1592 = vmatprep.subr.bf16.mxu0 0
    %1593 = vmatpush2.bf16.msra.mxu0 0
    %1594 = vmatprep.subr.bf16.mxu0 0
    %1595 = vmatpush2.bf16.msra.mxu0 0
    %1596 = vmatprep.subr.bf16.mxu0 0
    %1597 = vmatpush2.bf16.msra.mxu0 0
    %1598 = vmatprep.mubr.bf16.mxu0 0
    %1599 = vmatmul.mubr.bf16.gmra.mxu0 %v1561
    %v1600 = vpop.f32.mrf.mxu0
    %v1601 = vadd.f32 0.0, %v1600
    %v1602 = vpop.f32.mrf.mxu0
    %v1603 = vpop.f32.mrf.mxu0
    %v1604 = vpop.f32.mrf.mxu0
    %1605 = vdwg.mxu0
    %v1606 = vpack.c.bf16 %v1325, %v1279
    %v1607 = vpack.c.bf16 %v1417, %v1371
    %v1608 = vpack.c.bf16 %v1509, %v1463
    %v1609 = vpack.c.bf16 %v1601, %v1555
    %v1610 = vld [vmem:[%s3] sm:$0xf]
    %v1611 = vld [vmem:[%s3 + $0x4] sm:$0xf]
    %v1612 = vld [vmem:[%s3 + $0x8] sm:$0xf]
    %v1613 = vld [vmem:[%s3 + $0xc] sm:$0xf]
    %v1615 = vsel %vm751, %v1606, 0
    %v1618 = vsel %vm1240, %v1610, 0
    %1620 = vmatprep.subr.bf16.mxu0 0
    %1621 = vmatpush1.bf16.msra.mxu0 0
    %1622 = vmatprep.subr.bf16.mxu0 0
    %1623 = vmatpush1.bf16.msra.mxu0 0
    %1624 = vmatprep.subr.bf16.mxu0 0
    %1625 = vmatpush1.bf16.msra.mxu0 0
    %1626 = vmatprep.subr.bf16.mxu0 0
    %1627 = vmatpush1.bf16.msra.mxu0 0
    %1628 = vmatprep.subr.bf16.mxu0 0
    %1629 = vmatpush1.bf16.msra.mxu0 0
    %1630 = vmatprep.subr.bf16.mxu0 0
    %1631 = vmatpush1.bf16.msra.mxu0 0
    %1632 = vmatprep.subr.bf16.mxu0 0
    %1633 = vmatpush1.bf16.msra.mxu0 0
    %1634 = vmatprep.subr.bf16.mxu0 0
    %1635 = vmatpush1.bf16.msra.mxu0 %v1618
    %1636 = vmatprep.subr.bf16.mxu0 0
    %1637 = vmatpush2.bf16.msra.mxu0 0
    %1638 = vmatprep.subr.bf16.mxu0 0
    %1639 = vmatpush2.bf16.msra.mxu0 0
    %1640 = vmatprep.subr.bf16.mxu0 0
    %1641 = vmatpush2.bf16.msra.mxu0 0
    %1642 = vmatprep.subr.bf16.mxu0 0
    %1643 = vmatpush2.bf16.msra.mxu0 0
    %1644 = vmatprep.subr.bf16.mxu0 0
    %1645 = vmatpush2.bf16.msra.mxu0 0
    %1646 = vmatprep.subr.bf16.mxu0 0
    %1647 = vmatpush2.bf16.msra.mxu0 0
    %1648 = vmatprep.subr.bf16.mxu0 0
    %1649 = vmatpush2.bf16.msra.mxu0 0
    %1650 = vmatprep.subr.bf16.mxu0 0
    %1651 = vmatpush2.bf16.msra.mxu0 0
    %1652 = vmatprep.mubr.bf16.mxu0 0
    %1653 = vmatmul.mubr.bf16.gmra.mxu0 %v1615
    %v1654 = vpop.f32.mrf.mxu0
    %v1655 = vadd.f32 0.0, %v1654
    %v1656 = vpop.f32.mrf.mxu0
    %v1657 = vpop.f32.mrf.mxu0
    %v1658 = vadd.f32 0.0, %v1657
    %v1659 = vpop.f32.mrf.mxu0
    %1660 = vdwg.mxu0
    %v1662 = vsel %vm751, %v1607, 0
    %v1665 = vsel %vm1240, %v1611, 0
    %1667 = vmatprep.subr.bf16.mxu0 0
    %1668 = vmatpush1.bf16.msra.mxu0 0
    %1669 = vmatprep.subr.bf16.mxu0 0
    %1670 = vmatpush1.bf16.msra.mxu0 0
    %1671 = vmatprep.subr.bf16.mxu0 0
    %1672 = vmatpush1.bf16.msra.mxu0 0
    %1673 = vmatprep.subr.bf16.mxu0 0
    %1674 = vmatpush1.bf16.msra.mxu0 0
    %1675 = vmatprep.subr.bf16.mxu0 0
    %1676 = vmatpush1.bf16.msra.mxu0 0
    %1677 = vmatprep.subr.bf16.mxu0 0
    %1678 = vmatpush1.bf16.msra.mxu0 0
    %1679 = vmatprep.subr.bf16.mxu0 0
    %1680 = vmatpush1.bf16.msra.mxu0 0
    %1681 = vmatprep.subr.bf16.mxu0 0
    %1682 = vmatpush1.bf16.msra.mxu0 %v1665
    %1683 = vmatprep.subr.bf16.mxu0 0
    %1684 = vmatpush2.bf16.msra.mxu0 0
    %1685 = vmatprep.subr.bf16.mxu0 0
    %1686 = vmatpush2.bf16.msra.mxu0 0
    %1687 = vmatprep.subr.bf16.mxu0 0
    %1688 = vmatpush2.bf16.msra.mxu0 0
    %1689 = vmatprep.subr.bf16.mxu0 0
    %1690 = vmatpush2.bf16.msra.mxu0 0
    %1691 = vmatprep.subr.bf16.mxu0 0
    %1692 = vmatpush2.bf16.msra.mxu0 0
    %1693 = vmatprep.subr.bf16.mxu0 0
    %1694 = vmatpush2.bf16.msra.mxu0 0
    %1695 = vmatprep.subr.bf16.mxu0 0
    %1696 = vmatpush2.bf16.msra.mxu0 0
    %1697 = vmatprep.subr.bf16.mxu0 0
    %1698 = vmatpush2.bf16.msra.mxu0 0
    %1699 = vmatprep.mubr.bf16.mxu0 0
    %1700 = vmatmul.mubr.bf16.gmra.mxu0 %v1662
    %v1701 = vpop.f32.mrf.mxu0
    %v1702 = vadd.f32 0.0, %v1701
    %v1703 = vpop.f32.mrf.mxu0
    %v1704 = vpop.f32.mrf.mxu0
    %v1705 = vadd.f32 0.0, %v1704
    %v1706 = vpop.f32.mrf.mxu0
    %1707 = vdwg.mxu0
    %v1709 = vsel %vm751, %v1608, 0
    %v1712 = vsel %vm1240, %v1612, 0
    %1714 = vmatprep.subr.bf16.mxu0 0
    %1715 = vmatpush1.bf16.msra.mxu0 0
    %1716 = vmatprep.subr.bf16.mxu0 0
    %1717 = vmatpush1.bf16.msra.mxu0 0
    %1718 = vmatprep.subr.bf16.mxu0 0
    %1719 = vmatpush1.bf16.msra.mxu0 0
    %1720 = vmatprep.subr.bf16.mxu0 0
    %1721 = vmatpush1.bf16.msra.mxu0 0
    %1722 = vmatprep.subr.bf16.mxu0 0
    %1723 = vmatpush1.bf16.msra.mxu0 0
    %1724 = vmatprep.subr.bf16.mxu0 0
    %1725 = vmatpush1.bf16.msra.mxu0 0
    %1726 = vmatprep.subr.bf16.mxu0 0
    %1727 = vmatpush1.bf16.msra.mxu0 0
    %1728 = vmatprep.subr.bf16.mxu0 0
    %1729 = vmatpush1.bf16.msra.mxu0 %v1712
    %1730 = vmatprep.subr.bf16.mxu0 0
    %1731 = vmatpush2.bf16.msra.mxu0 0
    %1732 = vmatprep.subr.bf16.mxu0 0
    %1733 = vmatpush2.bf16.msra.mxu0 0
    %1734 = vmatprep.subr.bf16.mxu0 0
    %1735 = vmatpush2.bf16.msra.mxu0 0
    %1736 = vmatprep.subr.bf16.mxu0 0
    %1737 = vmatpush2.bf16.msra.mxu0 0
    %1738 = vmatprep.subr.bf16.mxu0 0
    %1739 = vmatpush2.bf16.msra.mxu0 0
    %1740 = vmatprep.subr.bf16.mxu0 0
    %1741 = vmatpush2.bf16.msra.mxu0 0
    %1742 = vmatprep.subr.bf16.mxu0 0
    %1743 = vmatpush2.bf16.msra.mxu0 0
    %1744 = vmatprep.subr.bf16.mxu0 0
    %1745 = vmatpush2.bf16.msra.mxu0 0
    %1746 = vmatprep.mubr.bf16.mxu0 0
    %1747 = vmatmul.mubr.bf16.gmra.mxu0 %v1709
    %v1748 = vpop.f32.mrf.mxu0
    %v1749 = vadd.f32 0.0, %v1748
    %v1750 = vpop.f32.mrf.mxu0
    %v1751 = vpop.f32.mrf.mxu0
    %v1752 = vadd.f32 0.0, %v1751
    %v1753 = vpop.f32.mrf.mxu0
    %1754 = vdwg.mxu0
    %v1756 = vsel %vm751, %v1609, 0
    %v1759 = vsel %vm1240, %v1613, 0
    %1761 = vmatprep.subr.bf16.mxu0 0
    %1762 = vmatpush1.bf16.msra.mxu0 0
    %1763 = vmatprep.subr.bf16.mxu0 0
    %1764 = vmatpush1.bf16.msra.mxu0 0
    %1765 = vmatprep.subr.bf16.mxu0 0
    %1766 = vmatpush1.bf16.msra.mxu0 0
    %1767 = vmatprep.subr.bf16.mxu0 0
    %1768 = vmatpush1.bf16.msra.mxu0 0
    %1769 = vmatprep.subr.bf16.mxu0 0
    %1770 = vmatpush1.bf16.msra.mxu0 0
    %1771 = vmatprep.subr.bf16.mxu0 0
    %1772 = vmatpush1.bf16.msra.mxu0 0
    %1773 = vmatprep.subr.bf16.mxu0 0
    %1774 = vmatpush1.bf16.msra.mxu0 0
    %1775 = vmatprep.subr.bf16.mxu0 0
    %1776 = vmatpush1.bf16.msra.mxu0 %v1759
    %1777 = vmatprep.subr.bf16.mxu0 0
    %1778 = vmatpush2.bf16.msra.mxu0 0
    %1779 = vmatprep.subr.bf16.mxu0 0
    %1780 = vmatpush2.bf16.msra.mxu0 0
    %1781 = vmatprep.subr.bf16.mxu0 0
    %1782 = vmatpush2.bf16.msra.mxu0 0
    %1783 = vmatprep.subr.bf16.mxu0 0
    %1784 = vmatpush2.bf16.msra.mxu0 0
    %1785 = vmatprep.subr.bf16.mxu0 0
    %1786 = vmatpush2.bf16.msra.mxu0 0
    %1787 = vmatprep.subr.bf16.mxu0 0
    %1788 = vmatpush2.bf16.msra.mxu0 0
    %1789 = vmatprep.subr.bf16.mxu0 0
    %1790 = vmatpush2.bf16.msra.mxu0 0
    %1791 = vmatprep.subr.bf16.mxu0 0
    %1792 = vmatpush2.bf16.msra.mxu0 0
    %1793 = vmatprep.mubr.bf16.mxu0 0
    %1794 = vmatmul.mubr.bf16.gmra.mxu0 %v1756
    %v1795 = vpop.f32.mrf.mxu0
    %v1796 = vadd.f32 0.0, %v1795
    %v1797 = vpop.f32.mrf.mxu0
    %v1798 = vpop.f32.mrf.mxu0
    %v1799 = vadd.f32 0.0, %v1798
    %v1800 = vpop.f32.mrf.mxu0
    %1801 = vdwg.mxu0
    %v1802 = vsel %vm99, %v1655, 0.0
    %v1803 = vsel %vm99, %v1702, 0.0
    %v1804 = vadd.f32 %v1802, %v1803
    %v1805 = vsel %vm99, %v1749, 0.0
    %v1806 = vadd.f32 %v1804, %v1805
    %v1807 = vsel %vm99, %v1796, 0.0
    %v1808 = vadd.f32 %v1806, %v1807
    %v1809 = vsel %vm99, %v1658, 0.0
    %v1810 = vsel %vm99, %v1705, 0.0
    %v1811 = vadd.f32 %v1809, %v1810
    %v1812 = vsel %vm99, %v1752, 0.0
    %v1813 = vadd.f32 %v1811, %v1812
    %v1814 = vsel %vm99, %v1799, 0.0
    %v1815 = vadd.f32 %v1813, %v1814
    %v1816 = vadd.f32 %v1808, %v36
    %v1817 = vadd.f32 %v1815, %v37
    %v1818 = vsel %vm99, %v1816, 0.0
    %1819 = vadd.xlane.f32.xlu0 %v1818
    %v1820 = vpop.xlane.xlu0 %1819
    %v1821 = vsel %vm99, %v1817, 0.0
    %1822 = vadd.xlane.f32.xlu0 %v1821
    %v1823 = vpop.xlane.xlu0 %1822
    %v1824 = vrcp.pop 32.0
    %v1825 = vmul.f32 %v1820, %v1824
    %v1826 = vmul.f32 %v1823, %v1824
    %v1827 = vsub.f32 %v1816, %v1825
    %v1828 = vsub.f32 %v1817, %v1826
    %v1829 = vmul.f32 %v1827, %v1827
    %v1830 = vmul.f32 %v1828, %v1828
    %v1831 = vsel %vm99, %v1829, 0.0
    %1832 = vadd.xlane.f32.xlu0 %v1831
    %v1833 = vpop.xlane.xlu0 %1832
    %v1834 = vsel %vm99, %v1830, 0.0
    %1835 = vadd.xlane.f32.xlu0 %v1834
    %v1836 = vpop.xlane.xlu0 %1835
    %v1837 = vmul.f32 %v1833, %v1824
    %v1838 = vmul.f32 %v1836, %v1824
    %v1839 = vadd.f32 %v1837, 1e-05
    %v1840 = vadd.f32 %v1838, 1e-05
    %v1841 = vrsqrt.pop %v1839
    %v1842 = vrsqrt.pop %v1840
    %v1843 = vmul.f32 %v1827, %v1841
    %v1844 = vmul.f32 %v1828, %v1842
    %1845 = vst.msk [vmem:[#allocation5] sm:$0xff] %vm99, %v1843
    %1846 = vst.msk [vmem:[#allocation5 + $0x8] sm:$0xff] %vm99, %v1844
    %1847 = vst.msk [vmem:[#allocation6] sm:$0xff] %vm751, %v1221
    %1848 = vst.msk [vmem:[#allocation6 + $0x8] sm:$0xff] %vm751, %v1222
    %1849 = vst.msk [vmem:[#allocation6 + $0x10] sm:$0xff] %vm751, %v1223
    %1850 = vst.msk [vmem:[#allocation6 + $0x18] sm:$0xff] %vm751, %v1224
    %1851 = vst.msk [vmem:[#allocation6 + $0x20] sm:$0xff] %vm751, %v1225
    %1852 = vst.msk [vmem:[#allocation6 + $0x28] sm:$0xff] %vm751, %v1226
    %1853 = vst.msk [vmem:[#allocation6 + $0x30] sm:$0xff] %vm751, %v1227
    %1854 = vst.msk [vmem:[#allocation6 + $0x38] sm:$0xff] %vm751, %v1228
    // Predicated region
    $region22: #{tpu_custom_call.1} parent=1 // pred_check
      _
    $region23: #{tpu_custom_call.1} parent=1 // pred_check_branch
      %1856 = sbr.rel (0) target = $region25
    $region24: #{tpu_custom_call.1} parent=1 // pred_region
      %s1858 = ssub.s32 256, 256
      %1859 = vsyncadd [#allocation3], %s1858
      %s1860 = sshll.u32 [#allocation5], 4
      %s1861 = int_to_ptr.vmem [resolvable:$true] %s1860
      %1866 = dma.vmem_to_hbm [thread:$0]  %s1861, 256, %s4, [#allocation3], 128, 128, 8
    $region25: #{tpu_custom_call.1} parent=1 // pred_fallthru
      _
    // Predicated region
    $region26: #{tpu_custom_call.1} parent=1 // pred_check
      _
    $region27: #{tpu_custom_call.1} parent=1 // pred_check_branch
      %1868 = sbr.rel (0) target = $region29
    $region28: #{tpu_custom_call.1} parent=1 // pred_region
      %s1870 = ssub.s32 1024, 1024
      %1871 = vsyncadd [#allocation7], %s1870
      %s1872 = sshll.u32 [#allocation6], 4
      %s1873 = int_to_ptr.vmem [resolvable:$true] %s1872
      %1878 = dma.vmem_to_hbm [thread:$0]  %s1873, 1024, %s5, [#allocation7], 128, 128, 8
    $region29: #{tpu_custom_call.1} parent=1 // pred_fallthru
      _
    // Predicated region
    $region30: #{tpu_custom_call.1} parent=1 // pred_check
      _
    $region31: #{tpu_custom_call.1} parent=1 // pred_check_branch
      %1880 = sbr.rel (0) target = $region33
    $region32: #{tpu_custom_call.1} parent=1 // pred_region
      %1881 = dma.done [#allocation3], 256
    $region33: #{tpu_custom_call.1} parent=1 // pred_fallthru
      _
    // Predicated region
    $region34: #{tpu_custom_call.1} parent=1 // pred_check
      _
    $region35: #{tpu_custom_call.1} parent=1 // pred_check_branch
      %1883 = sbr.rel (0) target = $region37
    $region36: #{tpu_custom_call.1} parent=1 // pred_region
      %1884 = dma.done [#allocation7], 1024
    $region37: #{tpu_custom_call.1} parent=1 // pred_fallthru
      _
    %1885 = vsyncpa [#allocation3], 1
    %1886 = vsyncpa [#allocation7], 1
    %1887 = vsyncpa [#allocation4], 1

</llo_original>
